<compile_context>
chip_gen: v5e
topology: v5e:2x2
jax: 0.10.0
libtpu: 0.0.40
codegen_flags: <defaults>
</compile_context>

<pallas_src>
import math

import jax
import jax.numpy as jnp
import numpy as np
from jax.experimental import pallas as pl
from jax.experimental.pallas import tpu as pltpu

NEG = -1e30  # stand-in for -inf in masked attention logits


# -------------------- shared math helpers --------------------

def _gelu(x):
    # matches the PyTorch module's `gelu` (tanh approximation)
    return 0.5 * x * (1.0 + jnp.tanh(math.sqrt(2.0 / math.pi) * (x + 0.044715 * x ** 3)))


def _layer_norm(x, g, b, eps=1e-5):
    mu = jnp.mean(x, axis=-1, keepdims=True)
    var = jnp.mean((x - mu) ** 2, axis=-1, keepdims=True)
    return (x - mu) * jax.lax.rsqrt(var + eps) * g + b


# -------------------- Pallas transformer stack (all layers in one kernel) --------------------

def make_transformer_stack(L, B, S, D, H, compute_dtype=jnp.bfloat16):
    """Returns a pallas_call-backed function running L TransformerBlocks
    (post-norm, causal mask, key-padding mask, eval mode / dropout = identity)."""
    dh = D // H

    def kernel(x_ref, pad_ref,
               wqkv_ref, bqkv_ref, wout_ref, bout_ref, ang_ref, anb_ref,
               w1_ref, b1_ref, w2_ref, b2_ref, fng_ref, fnb_ref,
               o_ref, bias_ref, rowall_ref):
        l = pl.program_id(0)

        # ---- layer 0: load activations into the resident output block and build masks ----
        @pl.when(l == 0)
        def _init():
            o_ref[...] = x_ref[...]
            rows = jax.lax.broadcasted_iota(jnp.int32, (S, S), 0)
            cols = jax.lax.broadcasted_iota(jnp.int32, (S, S), 1)
            future = (cols > rows)[None, :, :]                    # causal (triu, k=1)
            key_pad = (pad_ref[...] > 0.5)[:, None, :]            # (B,1,S) key padding
            mask_f = jnp.where(jnp.logical_or(future, key_pad), 1.0, 0.0)   # (B,S,S)
            bias_ref[...] = mask_f * NEG                          # additive mask bias
            rowall_ref[...] = jnp.min(mask_f, axis=-1, keepdims=True)  # 1.0 iff row fully masked

        x = o_ref[...].reshape(B * S, D)                          # (BS, D) f32, VMEM-resident
        xb = x.astype(compute_dtype)

        # ---- multi-head self attention (head-batched) ----
        # scale 1/sqrt(dh) is pre-folded into the Q columns of wqkv/bqkv
        qkv = jnp.dot(xb, wqkv_ref[0], preferred_element_type=jnp.float32) + bqkv_ref[0]  # (BS, 3D)
        qkv = qkv.reshape(B, S, 3 * H, dh).transpose(0, 2, 1, 3)  # (B, 3H, S, dh)
        q = qkv[:, 0:H].reshape(B * H, S, dh).astype(compute_dtype)
        k = qkv[:, H:2 * H].reshape(B * H, S, dh).astype(compute_dtype)
        v = qkv[:, 2 * H:].reshape(B * H, S, dh).astype(compute_dtype)

        s = jnp.einsum("zqd,zkd->zqk", q, k, preferred_element_type=jnp.float32)  # (BH,S,S)
        s = s.reshape(B, H, S, S) + bias_ref[...][:, None, :, :]
        m = jnp.max(s, axis=-1, keepdims=True)
        e = jnp.exp(s - m)                                        # masked entries underflow to 0
        denom = jnp.sum(e, axis=-1, keepdims=True)
        p = e * pl.reciprocal(denom, approx=True)                 # EUP reciprocal
        p = p * (1.0 - rowall_ref[...][:, None, :, :])            # fully-masked rows -> 0
        p = p.reshape(B * H, S, S).astype(compute_dtype)

        ctx = jnp.einsum("zqk,zkd->zqd", p, v, preferred_element_type=jnp.float32)  # (BH,S,dh)
        ctx = ctx.reshape(B, H, S, dh).transpose(0, 2, 1, 3).reshape(B * S, D)       # merge heads
        attn = jnp.dot(ctx.astype(compute_dtype), wout_ref[0],
                       preferred_element_type=jnp.float32) + bout_ref[0]

        y = _layer_norm(x + attn, ang_ref[0], anb_ref[0])         # post-norm

        # ---- feed forward ----
        h1 = jnp.dot(y.astype(compute_dtype), w1_ref[0],
                     preferred_element_type=jnp.float32) + b1_ref[0]
        h1 = _gelu(h1)
        h2 = jnp.dot(h1.astype(compute_dtype), w2_ref[0],
                     preferred_element_type=jnp.float32) + b2_ref[0]
        y = _layer_norm(y + h2, fng_ref[0], fnb_ref[0])

        o_ref[...] = y.reshape(B, S, D)                           # stays VMEM-resident

    def wspec(shape):
        n = len(shape)
        return pl.BlockSpec((1,) + shape, lambda l, n=n: (l,) + (0,) * n)

    return pl.pallas_call(
        kernel,
        out_shape=jax.ShapeDtypeStruct((B, S, D), jnp.float32),
        grid_spec=pltpu.PrefetchScalarGridSpec(
            num_scalar_prefetch=0,
            grid=(L,),
            in_specs=[
                pl.BlockSpec((B, S, D), lambda l: (0, 0, 0)),     # x (only consumed at l==0)
                pl.BlockSpec((B, S), lambda l: (0, 0)),           # key-padding mask (float)
                wspec((D, 3 * D)), wspec((1, 3 * D)),             # qkv_proj  (W bf16, b f32)
                wspec((D, D)), wspec((1, D)),                     # out_proj
                wspec((1, D)), wspec((1, D)),                     # attn_norm gamma/beta
                wspec((D, 4 * D)), wspec((1, 4 * D)),             # ff layer_1
                wspec((4 * D, D)), wspec((1, D)),                 # ff layer_2
                wspec((1, D)), wspec((1, D)),                     # ff_norm gamma/beta
            ],
            out_specs=pl.BlockSpec((B, S, D), lambda l: (0, 0, 0)),  # resident accumulator
            scratch_shapes=[
                pltpu.VMEM((B, S, S), jnp.float32),               # additive mask bias
                pltpu.VMEM((B, S, 1), jnp.float32),               # row-fully-masked flag
            ],
        ),
        compiler_params=pltpu.CompilerParams(dimension_semantics=("arbitrary",)),
    )


# -------------------- parameter prep (scale fold + stacking + bf16 weights) --------------------

def prepare_stacked_params(layers, D, H, compute_dtype=jnp.bfloat16):
    stack = lambda name: jnp.stack([lyr[name] for lyr in layers], axis=0)
    wqkv = stack("wqkv")
    bqkv = stack("bqkv")
    scale = 1.0 / math.sqrt(D // H)
    wqkv = wqkv.at[:, :, :D].multiply(scale)      # fold attention scale into Q columns
    bqkv = bqkv.at[:, :, :D].multiply(scale)
    return (
        wqkv.astype(compute_dtype), bqkv,
        stack("wout").astype(compute_dtype), stack("bout"),
        stack("an_g"), stack("an_b"),
        stack("w1").astype(compute_dtype), stack("b1"),
        stack("w2").astype(compute_dtype), stack("b2"),
        stack("fn_g"), stack("fn_b"),
    )


# -------------------- full Transformer forward (embedding glue in plain JAX) --------------------

def transformer_forward(tokens, tok_emb, pos_emb, prep, *, n_layers, B, S, D, H, padding_idx):
    padding_mask = tokens == padding_idx                               # (B, S) bool
    positions = jnp.cumsum((~padding_mask).astype(jnp.int32), axis=-1)
    positions = jnp.where(padding_mask, 0, positions)                  # pos_padding_idx = 0

    x = jnp.take(tok_emb, tokens, axis=0) + jnp.take(pos_emb, positions, axis=0)
    x = x.astype(jnp.float32)                                          # (B, S, D)
    pad_f = padding_mask.astype(jnp.float32)

    stack_fn = make_transformer_stack(n_layers, B, S, D, H)
    out = stack_fn(x, pad_f, *prep)
    # normalize_before=False -> final_norm is identity
    return out, padding_mask


# -------------------- plain-JAX reference (same mixed-precision policy) --------------------

def reference_forward(x0, pad_f, prep, *, L, B, S, D, H, compute_dtype=jnp.bfloat16):
    (wqkv, bqkv, wout, bout, ang, anb, w1, b1, w2, b2, fng, fnb) = prep
    dh = D // H
    rows = jax.lax.broadcasted_iota(jnp.int32, (S, S), 0)
    cols = jax.lax.broadcasted_iota(jnp.int32, (S, S), 1)
    mask_f = jnp.where((cols > rows)[None] | (pad_f[:, None, :] > 0.5), 1.0, 0.0)  # (B,S,S)
    bias = mask_f * NEG
    rowall = jnp.min(mask_f, axis=-1, keepdims=True)                               # (B,S,1)

    x = x0.reshape(B * S, D)
    for l in range(L):
        xb = x.astype(compute_dtype)
        qkv = jnp.dot(xb, wqkv[l], preferred_element_type=jnp.float32) + bqkv[l]
        qkv = qkv.reshape(B, S, 3 * H, dh).transpose(0, 2, 1, 3)
        q = qkv[:, 0:H].reshape(B * H, S, dh).astype(compute_dtype)
        k = qkv[:, H:2 * H].reshape(B * H, S, dh).astype(compute_dtype)
        v = qkv[:, 2 * H:].reshape(B * H, S, dh).astype(compute_dtype)
        s = jnp.einsum("zqd,zkd->zqk", q, k, preferred_element_type=jnp.float32)
        s = s.reshape(B, H, S, S) + bias[:, None, :, :]
        m = jnp.max(s, axis=-1, keepdims=True)
        e = jnp.exp(s - m)
        p = e / jnp.sum(e, axis=-1, keepdims=True)
        p = p * (1.0 - rowall[:, None, :, :])
        ctx = jnp.einsum("zqk,zkd->zqd", p.reshape(B * H, S, S).astype(compute_dtype), v,
                         preferred_element_type=jnp.float32)
        ctx = ctx.reshape(B, H, S, dh).transpose(0, 2, 1, 3).reshape(B * S, D)
        attn = jnp.dot(ctx.astype(compute_dtype), wout[l],
                       preferred_element_type=jnp.float32) + bout[l]
        x = _layer_norm(x + attn, ang[l], anb[l])
        h1 = _gelu(jnp.dot(x.astype(compute_dtype), w1[l],
                           preferred_element_type=jnp.float32) + b1[l])
        h2 = jnp.dot(h1.astype(compute_dtype), w2[l],
                     preferred_element_type=jnp.float32) + b2[l]
        x = _layer_norm(x + h2, fng[l], fnb[l])
    return x.reshape(B, S, D)


# -------------------- main --------------------

if __name__ == "__main__":
    N_LAYERS = 2
    VOCAB = 50
    N_POS = 16
    B, S, D, H = 2, 8, 32, 4
    PAD_IDX = 0

    key = jax.random.PRNGKey(0)
    k_emb, k_pos, k_tok, k_layers = jax.random.split(key, 4)

    def make_layer(k):
        ks = jax.random.split(k, 8)
        return {
            "wqkv": 0.02 * jax.random.normal(ks[0], (D, 3 * D), jnp.float32),
            "bqkv": 0.02 * jax.random.normal(ks[1], (1, 3 * D), jnp.float32),
            "wout": 0.02 * jax.random.normal(ks[2], (D, D), jnp.float32),
            "bout": 0.02 * jax.random.normal(ks[3], (1, D), jnp.float32),
            "an_g": jnp.ones((1, D), jnp.float32),
            "an_b": jnp.zeros((1, D), jnp.float32),
            "w1": 0.02 * jax.random.normal(ks[4], (D, 4 * D), jnp.float32),
            "b1": 0.02 * jax.random.normal(ks[5], (1, 4 * D), jnp.float32),
            "w2": 0.02 * jax.random.normal(ks[6], (4 * D, D), jnp.float32),
            "b2": 0.02 * jax.random.normal(ks[7], (1, D), jnp.float32),
            "fn_g": jnp.ones((1, D), jnp.float32),
            "fn_b": jnp.zeros((1, D), jnp.float32),
        }

    layers = [make_layer(k) for k in jax.random.split(k_layers, N_LAYERS)]
    tok_emb = 0.02 * jax.random.normal(k_emb, (VOCAB, D), jnp.float32)
    pos_emb = 0.01 * jax.random.normal(k_pos, (N_POS + 1, D), jnp.float32)

    tokens = jax.random.randint(k_tok, (B, S), 1, VOCAB, dtype=jnp.int32)
    tokens = tokens.at[1, S - 3:].set(PAD_IDX)   # exercise the key-padding mask

    prep = prepare_stacked_params(layers, D, H)

    out, pad_mask = transformer_forward(
        tokens, tok_emb, pos_emb, prep,
        n_layers=N_LAYERS, B=B, S=S, D=D, H=H, padding_idx=PAD_IDX)
    out = jax.block_until_ready(out)

    # sanity check against a pure-JAX reference using the same precision policy
    pad_f = pad_mask.astype(jnp.float32)
    positions = jnp.where(pad_mask, 0, jnp.cumsum((~pad_mask).astype(jnp.int32), axis=-1))
    x0 = jnp.take(tok_emb, tokens, axis=0) + jnp.take(pos_emb, positions, axis=0)
    ref = reference_forward(x0.astype(jnp.float32), pad_f, prep,
                            L=N_LAYERS, B=B, S=S, D=D, H=H)
    np.testing.assert_allclose(np.asarray(out), np.asarray(ref), rtol=2e-2, atol=2e-2)
    assert bool(jnp.all(jnp.isfinite(out)))

    print("KERNEL_OK")
</pallas_src>

<mosaic_0001>
module attributes {stable_mosaic.version = 11 : i64} {
  func.func @kernel(%arg0: i32, %arg1: memref<2x8x32xf32, #tpu.memory_space<vmem>>, %arg2: memref<2x8xf32, #tpu.memory_space<vmem>>, %arg3: memref<1x32x96xbf16, #tpu.memory_space<vmem>>, %arg4: memref<1x1x96xf32, #tpu.memory_space<vmem>>, %arg5: memref<1x32x32xbf16, #tpu.memory_space<vmem>>, %arg6: memref<1x1x32xf32, #tpu.memory_space<vmem>>, %arg7: memref<1x1x32xf32, #tpu.memory_space<vmem>>, %arg8: memref<1x1x32xf32, #tpu.memory_space<vmem>>, %arg9: memref<1x32x128xbf16, #tpu.memory_space<vmem>>, %arg10: memref<1x1x128xf32, #tpu.memory_space<vmem>>, %arg11: memref<1x128x32xbf16, #tpu.memory_space<vmem>>, %arg12: memref<1x1x32xf32, #tpu.memory_space<vmem>>, %arg13: memref<1x1x32xf32, #tpu.memory_space<vmem>>, %arg14: memref<1x1x32xf32, #tpu.memory_space<vmem>>, %arg15: memref<2x8x32xf32, #tpu.memory_space<vmem>>, %arg16: memref<2x8x8xf32, #tpu.memory_space<vmem>>, %arg17: memref<2x8x1xf32, #tpu.memory_space<vmem>>) attributes {dimension_semantics = [#tpu.dimension_semantics<arbitrary>], iteration_bounds = array<i64: 2>, scalar_prefetch = 0 : i64, scratch_operands = 2 : i64, tpu.core_type = #tpu.core_type<tc>, window_params = [{pipeline_mode = #tpu.pipeline_mode<synchronous>, transform_indices = @transform_0, window_bounds = array<i64: 2, 8, 32>}, {pipeline_mode = #tpu.pipeline_mode<synchronous>, transform_indices = @transform_1, window_bounds = array<i64: 2, 8>}, {transform_indices = @transform_2, window_bounds = array<i64: 1, 32, 96>}, {transform_indices = @transform_3, window_bounds = array<i64: 1, 1, 96>}, {transform_indices = @transform_4, window_bounds = array<i64: 1, 32, 32>}, {transform_indices = @transform_5, window_bounds = array<i64: 1, 1, 32>}, {transform_indices = @transform_6, window_bounds = array<i64: 1, 1, 32>}, {transform_indices = @transform_7, window_bounds = array<i64: 1, 1, 32>}, {transform_indices = @transform_8, window_bounds = array<i64: 1, 32, 128>}, {transform_indices = @transform_9, window_bounds = array<i64: 1, 1, 128>}, {transform_indices = @transform_10, window_bounds = array<i64: 1, 128, 32>}, {transform_indices = @transform_11, window_bounds = array<i64: 1, 1, 32>}, {transform_indices = @transform_12, window_bounds = array<i64: 1, 1, 32>}, {transform_indices = @transform_13, window_bounds = array<i64: 1, 1, 32>}, {pipeline_mode = #tpu.pipeline_mode<synchronous>, transform_indices = @transform_14, window_bounds = array<i64: 2, 8, 32>}]} {
    %c0_i32 = arith.constant 0 : i32
    %0 = arith.cmpi eq, %arg0, %c0_i32 : i32
    %1 = arith.extui %0 : i1 to i32
    %c0_i32_0 = arith.constant 0 : i32
    %2 = arith.cmpi ne, %1, %c0_i32_0 : i32
    scf.if %2 {
      %c0_70 = arith.constant 0 : index
      %c0_71 = arith.constant 0 : index
      %c0_72 = arith.constant 0 : index
      %145 = vector.load %arg1[%c0_70, %c0_71, %c0_72] : memref<2x8x32xf32, #tpu.memory_space<vmem>>, vector<2x8x32xf32>
      %c0_73 = arith.constant 0 : index
      %c0_74 = arith.constant 0 : index
      %c0_75 = arith.constant 0 : index
      %146 = vector.load %arg15[%c0_73, %c0_74, %c0_75] : memref<2x8x32xf32, #tpu.memory_space<vmem>>, vector<2x8x32xf32>
      tpu.vector_store %arg15[%c0_73, %c0_74, %c0_75], %145 {strides = array<i32>} : memref<2x8x32xf32, #tpu.memory_space<vmem>>, vector<2x8x32xf32>,
      %147 = tpu.iota {dimensions = array<i32: 0>} : vector<8x8xi32>
      %148 = tpu.iota {dimensions = array<i32: 1>} : vector<8x8xi32>
      %149 = arith.cmpi sgt, %148, %147 : vector<8x8xi32>
      %150 = vector.shape_cast %149 : vector<8x8xi1> to vector<1x8x8xi1>
      %c0_76 = arith.constant 0 : index
      %c0_77 = arith.constant 0 : index
      %151 = vector.load %arg2[%c0_76, %c0_77] : memref<2x8xf32, #tpu.memory_space<vmem>>, vector<2x8xf32>
      %cst_78 = arith.constant 5.000000e-01 : f32
      %152 = vector.broadcast %cst_78 : f32 to vector<2x8xf32>
      %153 = arith.cmpf ogt, %151, %152 : vector<2x8xf32>
      %154 = vector.shape_cast %153 : vector<2x8xi1> to vector<2x1x8xi1>
      %155 = vector.broadcast %150 : vector<1x8x8xi1> to vector<2x8x8xi1>
      %156 = vector.broadcast %154 : vector<2x1x8xi1> to vector<2x8x8xi1>
      %157 = arith.ori %155, %156 : vector<2x8x8xi1>
      %cst_79 = arith.constant 1.000000e+00 : f32
      %cst_80 = arith.constant 0.000000e+00 : f32
      %158 = vector.broadcast %cst_79 : f32 to vector<2x8x8xf32>
      %159 = vector.broadcast %cst_80 : f32 to vector<2x8x8xf32>
      %160 = arith.select %157, %158, %159 : vector<2x8x8xi1>, vector<2x8x8xf32>
      %cst_81 = arith.constant -1.000000e+30 : f32
      %161 = vector.broadcast %cst_81 : f32 to vector<2x8x8xf32>
      %162 = arith.mulf %160, %161 : vector<2x8x8xf32>
      %c0_82 = arith.constant 0 : index
      %c0_83 = arith.constant 0 : index
      %c0_84 = arith.constant 0 : index
      %163 = vector.load %arg16[%c0_82, %c0_83, %c0_84] : memref<2x8x8xf32, #tpu.memory_space<vmem>>, vector<2x8x8xf32>
      tpu.vector_store %arg16[%c0_82, %c0_83, %c0_84], %162 {strides = array<i32>} : memref<2x8x8xf32, #tpu.memory_space<vmem>>, vector<2x8x8xf32>,
      %cst_85 = arith.constant dense<0x7F800000> : vector<2x8xf32>
      %164 = vector.multi_reduction <minimumf>, %160, %cst_85 [2] : vector<2x8x8xf32> to vector<2x8xf32>
      %165 = vector.shape_cast %164 : vector<2x8xf32> to vector<2x8x1xf32>
      %c0_86 = arith.constant 0 : index
      %c0_87 = arith.constant 0 : index
      %c0_88 = arith.constant 0 : index
      %166 = vector.load %arg17[%c0_86, %c0_87, %c0_88] : memref<2x8x1xf32, #tpu.memory_space<vmem>>, vector<2x8x1xf32>
      tpu.vector_store %arg17[%c0_86, %c0_87, %c0_88], %165 {strides = array<i32>} : memref<2x8x1xf32, #tpu.memory_space<vmem>>, vector<2x8x1xf32>,
    } else {
    }
    %c0 = arith.constant 0 : index
    %c0_1 = arith.constant 0 : index
    %c0_2 = arith.constant 0 : index
    %3 = vector.load %arg15[%c0, %c0_1, %c0_2] : memref<2x8x32xf32, #tpu.memory_space<vmem>>, vector<2x8x32xf32>
    %4 = vector.shape_cast %3 : vector<2x8x32xf32> to vector<16x32xf32>
    %5 = arith.truncf %4 : vector<16x32xf32> to vector<16x32xbf16>
    %c0_3 = arith.constant 0 : index
    %c0_4 = arith.constant 0 : index
    %c0_5 = arith.constant 0 : index
    %6 = vector.load %arg3[%c0_3, %c0_4, %c0_5] : memref<1x32x96xbf16, #tpu.memory_space<vmem>>, vector<1x32x96xbf16>
    %7 = vector.shape_cast %6 : vector<1x32x96xbf16> to vector<32x96xbf16>
    %cst = arith.constant dense<0.000000e+00> : vector<16x96xf32>
    %8 = tpu.matmul %5, %7, %cst {dimension_numbers = #tpu.dot_dimension_numbers<[1], [0], [0], [1], [0, 0, 1, 1], [], []>} : vector<16x32xbf16>, vector<32x96xbf16>, vector<16x96xf32> -> vector<16x96xf32>
    %c0_6 = arith.constant 0 : index
    %c0_7 = arith.constant 0 : index
    %c0_8 = arith.constant 0 : index
    %9 = vector.load %arg4[%c0_6, %c0_7, %c0_8] : memref<1x1x96xf32, #tpu.memory_space<vmem>>, vector<1x1x96xf32>
    %10 = vector.shape_cast %9 : vector<1x1x96xf32> to vector<1x96xf32>
    %11 = vector.broadcast %10 : vector<1x96xf32> to vector<16x96xf32>
    %12 = arith.addf %8, %11 : vector<16x96xf32>
    %13 = vector.shape_cast %12 : vector<16x96xf32> to vector<2x8x12x8xf32>
    %14 = tpu.transpose %13, [0, 2, 1, 3] : vector<2x8x12x8xf32> -> vector<2x12x8x8xf32>
    %15 = vector.extract_strided_slice %14 {offsets = [0, 0, 0, 0], sizes = [2, 4, 8, 8], strides = [1, 1, 1, 1]} : vector<2x12x8x8xf32> to vector<2x4x8x8xf32>
    %16 = vector.shape_cast %15 : vector<2x4x8x8xf32> to vector<8x8x8xf32>
    %17 = arith.truncf %16 : vector<8x8x8xf32> to vector<8x8x8xbf16>
    %18 = vector.extract_strided_slice %14 {offsets = [0, 4, 0, 0], sizes = [2, 4, 8, 8], strides = [1, 1, 1, 1]} : vector<2x12x8x8xf32> to vector<2x4x8x8xf32>
    %19 = vector.shape_cast %18 : vector<2x4x8x8xf32> to vector<8x8x8xf32>
    %20 = arith.truncf %19 : vector<8x8x8xf32> to vector<8x8x8xbf16>
    %21 = vector.extract_strided_slice %14 {offsets = [0, 8, 0, 0], sizes = [2, 4, 8, 8], strides = [1, 1, 1, 1]} : vector<2x12x8x8xf32> to vector<2x4x8x8xf32>
    %22 = vector.shape_cast %21 : vector<2x4x8x8xf32> to vector<8x8x8xf32>
    %23 = arith.truncf %22 : vector<8x8x8xf32> to vector<8x8x8xbf16>
    "tpu.trace_start"() <{level = 10 : i32, message = "zqd,zkd->zqk"}> : () -> ()
    %cst_9 = arith.constant dense<0.000000e+00> : vector<8x8x8xf32>
    %24 = tpu.matmul %17, %20, %cst_9 {dimension_numbers = #tpu.dot_dimension_numbers<[2], [2], [1], [1], [0, 0, 0, 1, 1, 1], [0], [0]>} : vector<8x8x8xbf16>, vector<8x8x8xbf16>, vector<8x8x8xf32> -> vector<8x8x8xf32>
    "tpu.trace_stop"() : () -> ()
    %25 = vector.shape_cast %24 : vector<8x8x8xf32> to vector<2x4x8x8xf32>
    %c0_10 = arith.constant 0 : index
    %c0_11 = arith.constant 0 : index
    %c0_12 = arith.constant 0 : index
    %26 = vector.load %arg16[%c0_10, %c0_11, %c0_12] : memref<2x8x8xf32, #tpu.memory_space<vmem>>, vector<2x8x8xf32>
    %27 = vector.shape_cast %26 : vector<2x8x8xf32> to vector<2x1x8x8xf32>
    %28 = vector.broadcast %27 : vector<2x1x8x8xf32> to vector<2x4x8x8xf32>
    %29 = arith.addf %25, %28 : vector<2x4x8x8xf32>
    %cst_13 = arith.constant dense<0xFF800000> : vector<2x4x8xf32>
    %30 = vector.multi_reduction <maximumf>, %29, %cst_13 [3] : vector<2x4x8x8xf32> to vector<2x4x8xf32>
    %31 = vector.shape_cast %30 : vector<2x4x8xf32> to vector<2x4x8x1xf32>
    %32 = vector.broadcast %31 : vector<2x4x8x1xf32> to vector<2x4x8x8xf32>
    %33 = arith.subf %29, %32 : vector<2x4x8x8xf32>
    %34 = math.exp %33 : vector<2x4x8x8xf32>
    %cst_14 = arith.constant dense<0.000000e+00> : vector<2x4x8xf32>
    %35 = vector.multi_reduction <add>, %34, %cst_14 [3] : vector<2x4x8x8xf32> to vector<2x4x8xf32>
    %36 = vector.shape_cast %35 : vector<2x4x8xf32> to vector<2x4x8x1xf32>
    %37 = tpu.reciprocal %36 {approx = true} : vector<2x4x8x1xf32> -> vector<2x4x8x1xf32>
    %38 = vector.broadcast %37 : vector<2x4x8x1xf32> to vector<2x4x8x8xf32>
    %39 = arith.mulf %34, %38 : vector<2x4x8x8xf32>
    %c0_15 = arith.constant 0 : index
    %c0_16 = arith.constant 0 : index
    %c0_17 = arith.constant 0 : index
    %40 = vector.load %arg17[%c0_15, %c0_16, %c0_17] : memref<2x8x1xf32, #tpu.memory_space<vmem>>, vector<2x8x1xf32>
    %41 = vector.shape_cast %40 : vector<2x8x1xf32> to vector<2x1x8x1xf32>
    %cst_18 = arith.constant 1.000000e+00 : f32
    %42 = vector.broadcast %cst_18 : f32 to vector<2x1x8x1xf32>
    %43 = arith.subf %42, %41 : vector<2x1x8x1xf32>
    %44 = vector.broadcast %43 : vector<2x1x8x1xf32> to vector<2x4x8x8xf32>
    %45 = arith.mulf %39, %44 : vector<2x4x8x8xf32>
    %46 = vector.shape_cast %45 : vector<2x4x8x8xf32> to vector<8x8x8xf32>
    %47 = arith.truncf %46 : vector<8x8x8xf32> to vector<8x8x8xbf16>
    "tpu.trace_start"() <{level = 10 : i32, message = "zqk,zkd->zqd"}> : () -> ()
    %cst_19 = arith.constant dense<0.000000e+00> : vector<8x8x8xf32>
    %48 = tpu.matmul %47, %23, %cst_19 {dimension_numbers = #tpu.dot_dimension_numbers<[2], [1], [1], [2], [0, 0, 0, 1, 1, 2], [0], [0]>} : vector<8x8x8xbf16>, vector<8x8x8xbf16>, vector<8x8x8xf32> -> vector<8x8x8xf32>
    "tpu.trace_stop"() : () -> ()
    %49 = vector.shape_cast %48 : vector<8x8x8xf32> to vector<2x4x8x8xf32>
    %50 = tpu.transpose %49, [0, 2, 1, 3] : vector<2x4x8x8xf32> -> vector<2x8x4x8xf32>
    %51 = vector.shape_cast %50 : vector<2x8x4x8xf32> to vector<16x32xf32>
    %52 = arith.truncf %51 : vector<16x32xf32> to vector<16x32xbf16>
    %c0_20 = arith.constant 0 : index
    %c0_21 = arith.constant 0 : index
    %c0_22 = arith.constant 0 : index
    %53 = vector.load %arg5[%c0_20, %c0_21, %c0_22] : memref<1x32x32xbf16, #tpu.memory_space<vmem>>, vector<1x32x32xbf16>
    %54 = vector.shape_cast %53 : vector<1x32x32xbf16> to vector<32x32xbf16>
    %cst_23 = arith.constant dense<0.000000e+00> : vector<16x32xf32>
    %55 = tpu.matmul %52, %54, %cst_23 {dimension_numbers = #tpu.dot_dimension_numbers<[1], [0], [0], [1], [0, 0, 1, 1], [], []>} : vector<16x32xbf16>, vector<32x32xbf16>, vector<16x32xf32> -> vector<16x32xf32>
    %c0_24 = arith.constant 0 : index
    %c0_25 = arith.constant 0 : index
    %c0_26 = arith.constant 0 : index
    %56 = vector.load %arg6[%c0_24, %c0_25, %c0_26] : memref<1x1x32xf32, #tpu.memory_space<vmem>>, vector<1x1x32xf32>
    %57 = vector.shape_cast %56 : vector<1x1x32xf32> to vector<1x32xf32>
    %58 = vector.broadcast %57 : vector<1x32xf32> to vector<16x32xf32>
    %59 = arith.addf %55, %58 : vector<16x32xf32>
    %60 = arith.addf %4, %59 : vector<16x32xf32>
    %c0_27 = arith.constant 0 : index
    %c0_28 = arith.constant 0 : index
    %c0_29 = arith.constant 0 : index
    %61 = vector.load %arg7[%c0_27, %c0_28, %c0_29] : memref<1x1x32xf32, #tpu.memory_space<vmem>>, vector<1x1x32xf32>
    %62 = vector.shape_cast %61 : vector<1x1x32xf32> to vector<1x32xf32>
    %c0_30 = arith.constant 0 : index
    %c0_31 = arith.constant 0 : index
    %c0_32 = arith.constant 0 : index
    %63 = vector.load %arg8[%c0_30, %c0_31, %c0_32] : memref<1x1x32xf32, #tpu.memory_space<vmem>>, vector<1x1x32xf32>
    %64 = vector.shape_cast %63 : vector<1x1x32xf32> to vector<1x32xf32>
    %cst_33 = arith.constant dense<0.000000e+00> : vector<16xf32>
    %65 = vector.multi_reduction <add>, %60, %cst_33 [1] : vector<16x32xf32> to vector<16xf32>
    %66 = vector.shape_cast %65 : vector<16xf32> to vector<16x1xf32>
    %cst_34 = arith.constant 3.200000e+01 : f32
    %67 = vector.broadcast %cst_34 : f32 to vector<16x1xf32>
    %68 = arith.divf %66, %67 : vector<16x1xf32>
    %69 = vector.broadcast %68 : vector<16x1xf32> to vector<16x32xf32>
    %70 = arith.subf %60, %69 : vector<16x32xf32>
    %71 = arith.mulf %70, %70 : vector<16x32xf32>
    %cst_35 = arith.constant dense<0.000000e+00> : vector<16xf32>
    %72 = vector.multi_reduction <add>, %71, %cst_35 [1] : vector<16x32xf32> to vector<16xf32>
    %73 = vector.shape_cast %72 : vector<16xf32> to vector<16x1xf32>
    %cst_36 = arith.constant 3.200000e+01 : f32
    %74 = vector.broadcast %cst_36 : f32 to vector<16x1xf32>
    %75 = arith.divf %73, %74 : vector<16x1xf32>
    %76 = vector.broadcast %68 : vector<16x1xf32> to vector<16x32xf32>
    %77 = arith.subf %60, %76 : vector<16x32xf32>
    %cst_37 = arith.constant 9.99999974E-6 : f32
    %78 = vector.broadcast %cst_37 : f32 to vector<16x1xf32>
    %79 = arith.addf %75, %78 : vector<16x1xf32>
    %80 = math.rsqrt %79 : vector<16x1xf32>
    %81 = vector.broadcast %80 : vector<16x1xf32> to vector<16x32xf32>
    %82 = arith.mulf %77, %81 : vector<16x32xf32>
    %83 = vector.broadcast %62 : vector<1x32xf32> to vector<16x32xf32>
    %84 = arith.mulf %82, %83 : vector<16x32xf32>
    %85 = vector.broadcast %64 : vector<1x32xf32> to vector<16x32xf32>
    %86 = arith.addf %84, %85 : vector<16x32xf32>
    %87 = arith.truncf %86 : vector<16x32xf32> to vector<16x32xbf16>
    %c0_38 = arith.constant 0 : index
    %c0_39 = arith.constant 0 : index
    %c0_40 = arith.constant 0 : index
    %88 = vector.load %arg9[%c0_38, %c0_39, %c0_40] : memref<1x32x128xbf16, #tpu.memory_space<vmem>>, vector<1x32x128xbf16>
    %89 = vector.shape_cast %88 : vector<1x32x128xbf16> to vector<32x128xbf16>
    %cst_41 = arith.constant dense<0.000000e+00> : vector<16x128xf32>
    %90 = tpu.matmul %87, %89, %cst_41 {dimension_numbers = #tpu.dot_dimension_numbers<[1], [0], [0], [1], [0, 0, 1, 1], [], []>} : vector<16x32xbf16>, vector<32x128xbf16>, vector<16x128xf32> -> vector<16x128xf32>
    %c0_42 = arith.constant 0 : index
    %c0_43 = arith.constant 0 : index
    %c0_44 = arith.constant 0 : index
    %91 = vector.load %arg10[%c0_42, %c0_43, %c0_44] : memref<1x1x128xf32, #tpu.memory_space<vmem>>, vector<1x1x128xf32>
    %92 = vector.shape_cast %91 : vector<1x1x128xf32> to vector<1x128xf32>
    %93 = vector.broadcast %92 : vector<1x128xf32> to vector<16x128xf32>
    %94 = arith.addf %90, %93 : vector<16x128xf32>
    %cst_45 = arith.constant 5.000000e-01 : f32
    %95 = vector.broadcast %cst_45 : f32 to vector<16x128xf32>
    %96 = arith.mulf %95, %94 : vector<16x128xf32>
    %97 = arith.mulf %94, %94 : vector<16x128xf32>
    %98 = arith.mulf %94, %97 : vector<16x128xf32>
    %cst_46 = arith.constant 4.471500e-02 : f32
    %99 = vector.broadcast %cst_46 : f32 to vector<16x128xf32>
    %100 = arith.mulf %99, %98 : vector<16x128xf32>
    %101 = arith.addf %94, %100 : vector<16x128xf32>
    %cst_47 = arith.constant 0.797884583 : f32
    %102 = vector.broadcast %cst_47 : f32 to vector<16x128xf32>
    %103 = arith.mulf %102, %101 : vector<16x128xf32>
    %104 = math.tanh %103 : vector<16x128xf32>
    %cst_48 = arith.constant 1.000000e+00 : f32
    %105 = vector.broadcast %cst_48 : f32 to vector<16x128xf32>
    %106 = arith.addf %105, %104 : vector<16x128xf32>
    %107 = arith.mulf %96, %106 : vector<16x128xf32>
    %108 = arith.truncf %107 : vector<16x128xf32> to vector<16x128xbf16>
    %c0_49 = arith.constant 0 : index
    %c0_50 = arith.constant 0 : index
    %c0_51 = arith.constant 0 : index
    %109 = vector.load %arg11[%c0_49, %c0_50, %c0_51] : memref<1x128x32xbf16, #tpu.memory_space<vmem>>, vector<1x128x32xbf16>
    %110 = vector.shape_cast %109 : vector<1x128x32xbf16> to vector<128x32xbf16>
    %cst_52 = arith.constant dense<0.000000e+00> : vector<16x32xf32>
    %111 = tpu.matmul %108, %110, %cst_52 {dimension_numbers = #tpu.dot_dimension_numbers<[1], [0], [0], [1], [0, 0, 1, 1], [], []>} : vector<16x128xbf16>, vector<128x32xbf16>, vector<16x32xf32> -> vector<16x32xf32>
    %c0_53 = arith.constant 0 : index
    %c0_54 = arith.constant 0 : index
    %c0_55 = arith.constant 0 : index
    %112 = vector.load %arg12[%c0_53, %c0_54, %c0_55] : memref<1x1x32xf32, #tpu.memory_space<vmem>>, vector<1x1x32xf32>
    %113 = vector.shape_cast %112 : vector<1x1x32xf32> to vector<1x32xf32>
    %114 = vector.broadcast %113 : vector<1x32xf32> to vector<16x32xf32>
    %115 = arith.addf %111, %114 : vector<16x32xf32>
    %116 = arith.addf %86, %115 : vector<16x32xf32>
    %c0_56 = arith.constant 0 : index
    %c0_57 = arith.constant 0 : index
    %c0_58 = arith.constant 0 : index
    %117 = vector.load %arg13[%c0_56, %c0_57, %c0_58] : memref<1x1x32xf32, #tpu.memory_space<vmem>>, vector<1x1x32xf32>
    %118 = vector.shape_cast %117 : vector<1x1x32xf32> to vector<1x32xf32>
    %c0_59 = arith.constant 0 : index
    %c0_60 = arith.constant 0 : index
    %c0_61 = arith.constant 0 : index
    %119 = vector.load %arg14[%c0_59, %c0_60, %c0_61] : memref<1x1x32xf32, #tpu.memory_space<vmem>>, vector<1x1x32xf32>
    %120 = vector.shape_cast %119 : vector<1x1x32xf32> to vector<1x32xf32>
    %cst_62 = arith.constant dense<0.000000e+00> : vector<16xf32>
    %121 = vector.multi_reduction <add>, %116, %cst_62 [1] : vector<16x32xf32> to vector<16xf32>
    %122 = vector.shape_cast %121 : vector<16xf32> to vector<16x1xf32>
    %cst_63 = arith.constant 3.200000e+01 : f32
    %123 = vector.broadcast %cst_63 : f32 to vector<16x1xf32>
    %124 = arith.divf %122, %123 : vector<16x1xf32>
    %125 = vector.broadcast %124 : vector<16x1xf32> to vector<16x32xf32>
    %126 = arith.subf %116, %125 : vector<16x32xf32>
    %127 = arith.mulf %126, %126 : vector<16x32xf32>
    %cst_64 = arith.constant dense<0.000000e+00> : vector<16xf32>
    %128 = vector.multi_reduction <add>, %127, %cst_64 [1] : vector<16x32xf32> to vector<16xf32>
    %129 = vector.shape_cast %128 : vector<16xf32> to vector<16x1xf32>
    %cst_65 = arith.constant 3.200000e+01 : f32
    %130 = vector.broadcast %cst_65 : f32 to vector<16x1xf32>
    %131 = arith.divf %129, %130 : vector<16x1xf32>
    %132 = vector.broadcast %124 : vector<16x1xf32> to vector<16x32xf32>
    %133 = arith.subf %116, %132 : vector<16x32xf32>
    %cst_66 = arith.constant 9.99999974E-6 : f32
    %134 = vector.broadcast %cst_66 : f32 to vector<16x1xf32>
    %135 = arith.addf %131, %134 : vector<16x1xf32>
    %136 = math.rsqrt %135 : vector<16x1xf32>
    %137 = vector.broadcast %136 : vector<16x1xf32> to vector<16x32xf32>
    %138 = arith.mulf %133, %137 : vector<16x32xf32>
    %139 = vector.broadcast %118 : vector<1x32xf32> to vector<16x32xf32>
    %140 = arith.mulf %138, %139 : vector<16x32xf32>
    %141 = vector.broadcast %120 : vector<1x32xf32> to vector<16x32xf32>
    %142 = arith.addf %140, %141 : vector<16x32xf32>
    %143 = vector.shape_cast %142 : vector<16x32xf32> to vector<2x8x32xf32>
    %c0_67 = arith.constant 0 : index
    %c0_68 = arith.constant 0 : index
    %c0_69 = arith.constant 0 : index
    %144 = vector.load %arg15[%c0_67, %c0_68, %c0_69] : memref<2x8x32xf32, #tpu.memory_space<vmem>>, vector<2x8x32xf32>
    tpu.vector_store %arg15[%c0_67, %c0_68, %c0_69], %143 {strides = array<i32>} : memref<2x8x32xf32, #tpu.memory_space<vmem>>, vector<2x8x32xf32>,
    return
  }
  func.func @transform_0(%arg0: i32) -> (i32, i32, i32) {
    %c0_i32 = arith.constant 0 : i32
    %c0_i32_0 = arith.constant 0 : i32
    %c0_i32_1 = arith.constant 0 : i32
    %c0_i32_2 = arith.constant 0 : i32
    return %c0_i32, %c0_i32_0, %c0_i32_1 : i32, i32, i32
  }
  func.func @transform_1(%arg0: i32) -> (i32, i32) {
    %c0_i32 = arith.constant 0 : i32
    %c0_i32_0 = arith.constant 0 : i32
    %c0_i32_1 = arith.constant 0 : i32
    return %c0_i32, %c0_i32_0 : i32, i32
  }
  func.func @transform_2(%arg0: i32) -> (i32, i32, i32) {
    %c0_i32 = arith.constant 0 : i32
    %c0_i32_0 = arith.constant 0 : i32
    %c0_i32_1 = arith.constant 0 : i32
    return %arg0, %c0_i32, %c0_i32_0 : i32, i32, i32
  }
  func.func @transform_3(%arg0: i32) -> (i32, i32, i32) {
    %c0_i32 = arith.constant 0 : i32
    %c0_i32_0 = arith.constant 0 : i32
    %c0_i32_1 = arith.constant 0 : i32
    return %arg0, %c0_i32, %c0_i32_0 : i32, i32, i32
  }
  func.func @transform_4(%arg0: i32) -> (i32, i32, i32) {
    %c0_i32 = arith.constant 0 : i32
    %c0_i32_0 = arith.constant 0 : i32
    %c0_i32_1 = arith.constant 0 : i32
    return %arg0, %c0_i32, %c0_i32_0 : i32, i32, i32
  }
  func.func @transform_5(%arg0: i32) -> (i32, i32, i32) {
    %c0_i32 = arith.constant 0 : i32
    %c0_i32_0 = arith.constant 0 : i32
    %c0_i32_1 = arith.constant 0 : i32
    return %arg0, %c0_i32, %c0_i32_0 : i32, i32, i32
  }
  func.func @transform_6(%arg0: i32) -> (i32, i32, i32) {
    %c0_i32 = arith.constant 0 : i32
    %c0_i32_0 = arith.constant 0 : i32
    %c0_i32_1 = arith.constant 0 : i32
    return %arg0, %c0_i32, %c0_i32_0 : i32, i32, i32
  }
  func.func @transform_7(%arg0: i32) -> (i32, i32, i32) {
    %c0_i32 = arith.constant 0 : i32
    %c0_i32_0 = arith.constant 0 : i32
    %c0_i32_1 = arith.constant 0 : i32
    return %arg0, %c0_i32, %c0_i32_0 : i32, i32, i32
  }
  func.func @transform_8(%arg0: i32) -> (i32, i32, i32) {
    %c0_i32 = arith.constant 0 : i32
    %c0_i32_0 = arith.constant 0 : i32
    %c0_i32_1 = arith.constant 0 : i32
    return %arg0, %c0_i32, %c0_i32_0 : i32, i32, i32
  }
  func.func @transform_9(%arg0: i32) -> (i32, i32, i32) {
    %c0_i32 = arith.constant 0 : i32
    %c0_i32_0 = arith.constant 0 : i32
    %c0_i32_1 = arith.constant 0 : i32
    return %arg0, %c0_i32, %c0_i32_0 : i32, i32, i32
  }
  func.func @transform_10(%arg0: i32) -> (i32, i32, i32) {
    %c0_i32 = arith.constant 0 : i32
    %c0_i32_0 = arith.constant 0 : i32
    %c0_i32_1 = arith.constant 0 : i32
    return %arg0, %c0_i32, %c0_i32_0 : i32, i32, i32
  }
  func.func @transform_11(%arg0: i32) -> (i32, i32, i32) {
    %c0_i32 = arith.constant 0 : i32
    %c0_i32_0 = arith.constant 0 : i32
    %c0_i32_1 = arith.constant 0 : i32
    return %arg0, %c0_i32, %c0_i32_0 : i32, i32, i32
  }
  func.func @transform_12(%arg0: i32) -> (i32, i32, i32) {
    %c0_i32 = arith.constant 0 : i32
    %c0_i32_0 = arith.constant 0 : i32
    %c0_i32_1 = arith.constant 0 : i32
    return %arg0, %c0_i32, %c0_i32_0 : i32, i32, i32
  }
  func.func @transform_13(%arg0: i32) -> (i32, i32, i32) {
    %c0_i32 = arith.constant 0 : i32
    %c0_i32_0 = arith.constant 0 : i32
    %c0_i32_1 = arith.constant 0 : i32
    return %arg0, %c0_i32, %c0_i32_0 : i32, i32, i32
  }
  func.func @transform_14(%arg0: i32) -> (i32, i32, i32) {
    %c0_i32 = arith.constant 0 : i32
    %c0_i32_0 = arith.constant 0 : i32
    %c0_i32_1 = arith.constant 0 : i32
    %c0_i32_2 = arith.constant 0 : i32
    return %c0_i32, %c0_i32_0, %c0_i32_1 : i32, i32, i32
  }
}

</mosaic_0001>

<llo_original>
// kernel: tpu_custom_call.1
$region0: #{tpu_custom_call.1}
  #allocation0 [shape = 'u32[]', space=smem, size = 0x4, offset = 0x4, fixed_abs, tag = 'smem constant byte address 0x4 - core index']
  #allocation1 [shape = 'u32[72,128]{1,0:T(1,128)}', space=vmem, size = 0x9000, scoped, tag = 'internal scratch']
  #allocation2 [shape = 'f32[2,8,8]{2,1,0:T(8,128)}', space=vmem, size = 0x2000, scoped, tag = 'scratch operand']
  #allocation3 [shape = 'f32[2,8,1]{2,1,0:T(8,128)}', space=vmem, size = 0x2000, scoped, tag = 'scratch operand']
  %s0 = inlined_call_operand.vmem [shape: f32[2,8,32], index: 0, kind: input, shape index: {}]
  %s1 = inlined_call_operand.vmem [shape: f32[2,8], index: 1, kind: input, shape index: {}]
  %s2 = inlined_call_operand.vmem [shape: bf16[2,32,96], index: 2, kind: input, shape index: {}]
  %s3 = inlined_call_operand.vmem [shape: f32[2,1,96], index: 3, kind: input, shape index: {}]
  %s4 = inlined_call_operand.vmem [shape: bf16[2,32,32], index: 4, kind: input, shape index: {}]
  %s5 = inlined_call_operand.vmem [shape: f32[2,1,32], index: 5, kind: input, shape index: {}]
  %s6 = inlined_call_operand.vmem [shape: f32[2,1,32], index: 6, kind: input, shape index: {}]
  %s7 = inlined_call_operand.vmem [shape: f32[2,1,32], index: 7, kind: input, shape index: {}]
  %s8 = inlined_call_operand.vmem [shape: bf16[2,32,128], index: 8, kind: input, shape index: {}]
  %s9 = inlined_call_operand.vmem [shape: f32[2,1,128], index: 9, kind: input, shape index: {}]
  %s10 = inlined_call_operand.vmem [shape: bf16[2,128,32], index: 10, kind: input, shape index: {}]
  %s11 = inlined_call_operand.vmem [shape: f32[2,1,32], index: 11, kind: input, shape index: {}]
  %s12 = inlined_call_operand.vmem [shape: f32[2,1,32], index: 12, kind: input, shape index: {}]
  %s13 = inlined_call_operand.vmem [shape: f32[2,1,32], index: 13, kind: input, shape index: {}]
  %s14 = inlined_call_operand.hbm [shape: f32[2,8,32], index: 14, kind: output, shape index: {}]
  %s15 = sld [smem:[#allocation0]]
  $region93: #{tpu_custom_call.1} parent=0
    _
  %s17 = ssub.s32 1, %s15
  %s18 = scalar_select 0, %s17, %s15
  $region1: #{tpu_custom_call.1} parent=0
    #allocation4 [shape = 'u8[8192]{0}', space=vmem, size = 0x2000, scoped, tag = 'output window, operand 0, single buffered']
    #allocation5 [shape = 's32[2]{0}', space=sflag, size = 0x8, scoped, tag = 'scoped memory for tpu_custom_call.1']
    %19 = vsyncpa [#allocation5], 0
    loop: start=0, step=1, limit=4
    $region2: #{tpu_custom_call.1} parent=1 // loop_pre_header
      _
    $region3: #{tpu_custom_call.1} parent=1 // loop_header
      %s21 = sphi 0, %s25
      %p22 = scmp.ge.s32.totalorder %s21, 4
      %s29 = sphi 0, %s29
      %s31 = sphi 0, %s29
      %s32 = sphi 0, %s31
      %s46 = sphi 0, %s32
      %s50 = sphi 0, %s50
      %s52 = sphi 0, %s50
      %s53 = sphi 0, %s52
      %s67 = sphi 0, %s53
      %s73 = sphi 0, %s75
      %s76 = sphi 0, %s73
      %s77 = sphi 0, %s76
      %s93 = sphi 0, %s77
      %s99 = sphi 0, %s101
      %s102 = sphi 0, %s99
      %s103 = sphi 0, %s102
      %s119 = sphi 0, %s103
      %s125 = sphi 0, %s127
      %s128 = sphi 0, %s125
      %s129 = sphi 0, %s128
      %s145 = sphi 0, %s129
      %s151 = sphi 0, %s153
      %s154 = sphi 0, %s151
      %s155 = sphi 0, %s154
      %s171 = sphi 0, %s155
      %s177 = sphi 0, %s179
      %s180 = sphi 0, %s177
      %s181 = sphi 0, %s180
      %s197 = sphi 0, %s181
      %s203 = sphi 0, %s205
      %s206 = sphi 0, %s203
      %s207 = sphi 0, %s206
      %s223 = sphi 0, %s207
      %s229 = sphi 0, %s231
      %s232 = sphi 0, %s229
      %s233 = sphi 0, %s232
      %s249 = sphi 0, %s233
      %s255 = sphi 0, %s257
      %s258 = sphi 0, %s255
      %s259 = sphi 0, %s258
      %s275 = sphi 0, %s259
      %s281 = sphi 0, %s283
      %s284 = sphi 0, %s281
      %s285 = sphi 0, %s284
      %s301 = sphi 0, %s285
      %s307 = sphi 0, %s309
      %s310 = sphi 0, %s307
      %s311 = sphi 0, %s310
      %s327 = sphi 0, %s311
      %s333 = sphi 0, %s335
      %s336 = sphi 0, %s333
      %s337 = sphi 0, %s336
      %s353 = sphi 0, %s337
      %s359 = sphi 0, %s361
      %s362 = sphi 0, %s359
      %s363 = sphi 0, %s362
      %s379 = sphi 0, %s363
      %s383 = sphi 0, %s383
      %s385 = sphi 0, %s383
      %s386 = sphi 0, %s385
      %s400 = sphi 0, %s386
    $region4: #{tpu_custom_call.1} parent=1 // loop_header_branch
      %24 = sbr.rel (%p22) target = $region8
    $region5: #{tpu_custom_call.1} parent=1 // loop_body
      %s26 = ssub.s32 %s21, 1
      %s27 = ssub.s32 %s21, 2
      %s28 = sadd.s32 %s21, 1
      %s30 = sadd.s32 %s29, 1
      %p33 = scmp.eq.s32.totalorder %s21, 1
      %p34 = scmp.ne.s32.totalorder %s29, %s31
      %p35 = scmp.eq.s32.totalorder %s21, 0
      %p36 = por %p34, %p35
      %p37 = scmp.ne.s32.totalorder %s29, %s31
      %p38 = scmp.eq.s32.totalorder %s26, 1
      %p39 = por %p37, %p38
      %p40 = scmp.ne.s32.totalorder %s31, %s32
      %p41 = scmp.eq.s32.totalorder %s26, 0
      %p42 = por %p40, %p41
      %p43 = scmp.ne.s32.totalorder %s31, %s32
      %p44 = scmp.eq.s32.totalorder %s27, 1
      %p45 = por %p43, %p44
      %p47 = scmp.ne.s32.totalorder %s32, %s46
      %p48 = scmp.eq.s32.totalorder %s27, 0
      %p49 = por %p47, %p48
      %s51 = sadd.s32 %s50, 1
      %p54 = scmp.eq.s32.totalorder %s21, 1
      %p55 = scmp.ne.s32.totalorder %s50, %s52
      %p56 = scmp.eq.s32.totalorder %s21, 0
      %p57 = por %p55, %p56
      %p58 = scmp.ne.s32.totalorder %s50, %s52
      %p59 = scmp.eq.s32.totalorder %s26, 1
      %p60 = por %p58, %p59
      %p61 = scmp.ne.s32.totalorder %s52, %s53
      %p62 = scmp.eq.s32.totalorder %s26, 0
      %p63 = por %p61, %p62
      %p64 = scmp.ne.s32.totalorder %s52, %s53
      %p65 = scmp.eq.s32.totalorder %s27, 1
      %p66 = por %p64, %p65
      %p68 = scmp.ne.s32.totalorder %s53, %s67
      %p69 = scmp.eq.s32.totalorder %s27, 0
      %p70 = por %p68, %p69
      %s71 = ssub.s32 %s21, %s28
      %p72 = scmp.eq.s32.totalorder %s71, 0
      %s74 = sadd.s32 %s73, 1
      %s75 = scalar_select %p72, %s73, %s74
      %p78 = pneg %p72
      %p79 = scmp.eq.s32.totalorder %s21, 1
      %p80 = por %p78, %p79
      %p81 = scmp.ne.s32.totalorder %s73, %s76
      %p82 = scmp.eq.s32.totalorder %s21, 0
      %p83 = por %p81, %p82
      %p84 = scmp.ne.s32.totalorder %s73, %s76
      %p85 = scmp.eq.s32.totalorder %s26, 1
      %p86 = por %p84, %p85
      %p87 = scmp.ne.s32.totalorder %s76, %s77
      %p88 = scmp.eq.s32.totalorder %s26, 0
      %p89 = por %p87, %p88
      %p90 = scmp.ne.s32.totalorder %s76, %s77
      %p91 = scmp.eq.s32.totalorder %s27, 1
      %p92 = por %p90, %p91
      %p94 = scmp.ne.s32.totalorder %s77, %s93
      %p95 = scmp.eq.s32.totalorder %s27, 0
      %p96 = por %p94, %p95
      %s97 = ssub.s32 %s21, %s28
      %p98 = scmp.eq.s32.totalorder %s97, 0
      %s100 = sadd.s32 %s99, 1
      %s101 = scalar_select %p98, %s99, %s100
      %p104 = pneg %p98
      %p105 = scmp.eq.s32.totalorder %s21, 1
      %p106 = por %p104, %p105
      %p107 = scmp.ne.s32.totalorder %s99, %s102
      %p108 = scmp.eq.s32.totalorder %s21, 0
      %p109 = por %p107, %p108
      %p110 = scmp.ne.s32.totalorder %s99, %s102
      %p111 = scmp.eq.s32.totalorder %s26, 1
      %p112 = por %p110, %p111
      %p113 = scmp.ne.s32.totalorder %s102, %s103
      %p114 = scmp.eq.s32.totalorder %s26, 0
      %p115 = por %p113, %p114
      %p116 = scmp.ne.s32.totalorder %s102, %s103
      %p117 = scmp.eq.s32.totalorder %s27, 1
      %p118 = por %p116, %p117
      %p120 = scmp.ne.s32.totalorder %s103, %s119
      %p121 = scmp.eq.s32.totalorder %s27, 0
      %p122 = por %p120, %p121
      %s123 = ssub.s32 %s21, %s28
      %p124 = scmp.eq.s32.totalorder %s123, 0
      %s126 = sadd.s32 %s125, 1
      %s127 = scalar_select %p124, %s125, %s126
      %p130 = pneg %p124
      %p131 = scmp.eq.s32.totalorder %s21, 1
      %p132 = por %p130, %p131
      %p133 = scmp.ne.s32.totalorder %s125, %s128
      %p134 = scmp.eq.s32.totalorder %s21, 0
      %p135 = por %p133, %p134
      %p136 = scmp.ne.s32.totalorder %s125, %s128
      %p137 = scmp.eq.s32.totalorder %s26, 1
      %p138 = por %p136, %p137
      %p139 = scmp.ne.s32.totalorder %s128, %s129
      %p140 = scmp.eq.s32.totalorder %s26, 0
      %p141 = por %p139, %p140
      %p142 = scmp.ne.s32.totalorder %s128, %s129
      %p143 = scmp.eq.s32.totalorder %s27, 1
      %p144 = por %p142, %p143
      %p146 = scmp.ne.s32.totalorder %s129, %s145
      %p147 = scmp.eq.s32.totalorder %s27, 0
      %p148 = por %p146, %p147
      %s149 = ssub.s32 %s21, %s28
      %p150 = scmp.eq.s32.totalorder %s149, 0
      %s152 = sadd.s32 %s151, 1
      %s153 = scalar_select %p150, %s151, %s152
      %p156 = pneg %p150
      %p157 = scmp.eq.s32.totalorder %s21, 1
      %p158 = por %p156, %p157
      %p159 = scmp.ne.s32.totalorder %s151, %s154
      %p160 = scmp.eq.s32.totalorder %s21, 0
      %p161 = por %p159, %p160
      %p162 = scmp.ne.s32.totalorder %s151, %s154
      %p163 = scmp.eq.s32.totalorder %s26, 1
      %p164 = por %p162, %p163
      %p165 = scmp.ne.s32.totalorder %s154, %s155
      %p166 = scmp.eq.s32.totalorder %s26, 0
      %p167 = por %p165, %p166
      %p168 = scmp.ne.s32.totalorder %s154, %s155
      %p169 = scmp.eq.s32.totalorder %s27, 1
      %p170 = por %p168, %p169
      %p172 = scmp.ne.s32.totalorder %s155, %s171
      %p173 = scmp.eq.s32.totalorder %s27, 0
      %p174 = por %p172, %p173
      %s175 = ssub.s32 %s21, %s28
      %p176 = scmp.eq.s32.totalorder %s175, 0
      %s178 = sadd.s32 %s177, 1
      %s179 = scalar_select %p176, %s177, %s178
      %p182 = pneg %p176
      %p183 = scmp.eq.s32.totalorder %s21, 1
      %p184 = por %p182, %p183
      %p185 = scmp.ne.s32.totalorder %s177, %s180
      %p186 = scmp.eq.s32.totalorder %s21, 0
      %p187 = por %p185, %p186
      %p188 = scmp.ne.s32.totalorder %s177, %s180
      %p189 = scmp.eq.s32.totalorder %s26, 1
      %p190 = por %p188, %p189
      %p191 = scmp.ne.s32.totalorder %s180, %s181
      %p192 = scmp.eq.s32.totalorder %s26, 0
      %p193 = por %p191, %p192
      %p194 = scmp.ne.s32.totalorder %s180, %s181
      %p195 = scmp.eq.s32.totalorder %s27, 1
      %p196 = por %p194, %p195
      %p198 = scmp.ne.s32.totalorder %s181, %s197
      %p199 = scmp.eq.s32.totalorder %s27, 0
      %p200 = por %p198, %p199
      %s201 = ssub.s32 %s21, %s28
      %p202 = scmp.eq.s32.totalorder %s201, 0
      %s204 = sadd.s32 %s203, 1
      %s205 = scalar_select %p202, %s203, %s204
      %p208 = pneg %p202
      %p209 = scmp.eq.s32.totalorder %s21, 1
      %p210 = por %p208, %p209
      %p211 = scmp.ne.s32.totalorder %s203, %s206
      %p212 = scmp.eq.s32.totalorder %s21, 0
      %p213 = por %p211, %p212
      %p214 = scmp.ne.s32.totalorder %s203, %s206
      %p215 = scmp.eq.s32.totalorder %s26, 1
      %p216 = por %p214, %p215
      %p217 = scmp.ne.s32.totalorder %s206, %s207
      %p218 = scmp.eq.s32.totalorder %s26, 0
      %p219 = por %p217, %p218
      %p220 = scmp.ne.s32.totalorder %s206, %s207
      %p221 = scmp.eq.s32.totalorder %s27, 1
      %p222 = por %p220, %p221
      %p224 = scmp.ne.s32.totalorder %s207, %s223
      %p225 = scmp.eq.s32.totalorder %s27, 0
      %p226 = por %p224, %p225
      %s227 = ssub.s32 %s21, %s28
      %p228 = scmp.eq.s32.totalorder %s227, 0
      %s230 = sadd.s32 %s229, 1
      %s231 = scalar_select %p228, %s229, %s230
      %p234 = pneg %p228
      %p235 = scmp.eq.s32.totalorder %s21, 1
      %p236 = por %p234, %p235
      %p237 = scmp.ne.s32.totalorder %s229, %s232
      %p238 = scmp.eq.s32.totalorder %s21, 0
      %p239 = por %p237, %p238
      %p240 = scmp.ne.s32.totalorder %s229, %s232
      %p241 = scmp.eq.s32.totalorder %s26, 1
      %p242 = por %p240, %p241
      %p243 = scmp.ne.s32.totalorder %s232, %s233
      %p244 = scmp.eq.s32.totalorder %s26, 0
      %p245 = por %p243, %p244
      %p246 = scmp.ne.s32.totalorder %s232, %s233
      %p247 = scmp.eq.s32.totalorder %s27, 1
      %p248 = por %p246, %p247
      %p250 = scmp.ne.s32.totalorder %s233, %s249
      %p251 = scmp.eq.s32.totalorder %s27, 0
      %p252 = por %p250, %p251
      %s253 = ssub.s32 %s21, %s28
      %p254 = scmp.eq.s32.totalorder %s253, 0
      %s256 = sadd.s32 %s255, 1
      %s257 = scalar_select %p254, %s255, %s256
      %p260 = pneg %p254
      %p261 = scmp.eq.s32.totalorder %s21, 1
      %p262 = por %p260, %p261
      %p263 = scmp.ne.s32.totalorder %s255, %s258
      %p264 = scmp.eq.s32.totalorder %s21, 0
      %p265 = por %p263, %p264
      %p266 = scmp.ne.s32.totalorder %s255, %s258
      %p267 = scmp.eq.s32.totalorder %s26, 1
      %p268 = por %p266, %p267
      %p269 = scmp.ne.s32.totalorder %s258, %s259
      %p270 = scmp.eq.s32.totalorder %s26, 0
      %p271 = por %p269, %p270
      %p272 = scmp.ne.s32.totalorder %s258, %s259
      %p273 = scmp.eq.s32.totalorder %s27, 1
      %p274 = por %p272, %p273
      %p276 = scmp.ne.s32.totalorder %s259, %s275
      %p277 = scmp.eq.s32.totalorder %s27, 0
      %p278 = por %p276, %p277
      %s279 = ssub.s32 %s21, %s28
      %p280 = scmp.eq.s32.totalorder %s279, 0
      %s282 = sadd.s32 %s281, 1
      %s283 = scalar_select %p280, %s281, %s282
      %p286 = pneg %p280
      %p287 = scmp.eq.s32.totalorder %s21, 1
      %p288 = por %p286, %p287
      %p289 = scmp.ne.s32.totalorder %s281, %s284
      %p290 = scmp.eq.s32.totalorder %s21, 0
      %p291 = por %p289, %p290
      %p292 = scmp.ne.s32.totalorder %s281, %s284
      %p293 = scmp.eq.s32.totalorder %s26, 1
      %p294 = por %p292, %p293
      %p295 = scmp.ne.s32.totalorder %s284, %s285
      %p296 = scmp.eq.s32.totalorder %s26, 0
      %p297 = por %p295, %p296
      %p298 = scmp.ne.s32.totalorder %s284, %s285
      %p299 = scmp.eq.s32.totalorder %s27, 1
      %p300 = por %p298, %p299
      %p302 = scmp.ne.s32.totalorder %s285, %s301
      %p303 = scmp.eq.s32.totalorder %s27, 0
      %p304 = por %p302, %p303
      %s305 = ssub.s32 %s21, %s28
      %p306 = scmp.eq.s32.totalorder %s305, 0
      %s308 = sadd.s32 %s307, 1
      %s309 = scalar_select %p306, %s307, %s308
      %p312 = pneg %p306
      %p313 = scmp.eq.s32.totalorder %s21, 1
      %p314 = por %p312, %p313
      %p315 = scmp.ne.s32.totalorder %s307, %s310
      %p316 = scmp.eq.s32.totalorder %s21, 0
      %p317 = por %p315, %p316
      %p318 = scmp.ne.s32.totalorder %s307, %s310
      %p319 = scmp.eq.s32.totalorder %s26, 1
      %p320 = por %p318, %p319
      %p321 = scmp.ne.s32.totalorder %s310, %s311
      %p322 = scmp.eq.s32.totalorder %s26, 0
      %p323 = por %p321, %p322
      %p324 = scmp.ne.s32.totalorder %s310, %s311
      %p325 = scmp.eq.s32.totalorder %s27, 1
      %p326 = por %p324, %p325
      %p328 = scmp.ne.s32.totalorder %s311, %s327
      %p329 = scmp.eq.s32.totalorder %s27, 0
      %p330 = por %p328, %p329
      %s331 = ssub.s32 %s21, %s28
      %p332 = scmp.eq.s32.totalorder %s331, 0
      %s334 = sadd.s32 %s333, 1
      %s335 = scalar_select %p332, %s333, %s334
      %p338 = pneg %p332
      %p339 = scmp.eq.s32.totalorder %s21, 1
      %p340 = por %p338, %p339
      %p341 = scmp.ne.s32.totalorder %s333, %s336
      %p342 = scmp.eq.s32.totalorder %s21, 0
      %p343 = por %p341, %p342
      %p344 = scmp.ne.s32.totalorder %s333, %s336
      %p345 = scmp.eq.s32.totalorder %s26, 1
      %p346 = por %p344, %p345
      %p347 = scmp.ne.s32.totalorder %s336, %s337
      %p348 = scmp.eq.s32.totalorder %s26, 0
      %p349 = por %p347, %p348
      %p350 = scmp.ne.s32.totalorder %s336, %s337
      %p351 = scmp.eq.s32.totalorder %s27, 1
      %p352 = por %p350, %p351
      %p354 = scmp.ne.s32.totalorder %s337, %s353
      %p355 = scmp.eq.s32.totalorder %s27, 0
      %p356 = por %p354, %p355
      %s357 = ssub.s32 %s21, %s28
      %p358 = scmp.eq.s32.totalorder %s357, 0
      %s360 = sadd.s32 %s359, 1
      %s361 = scalar_select %p358, %s359, %s360
      %p364 = pneg %p358
      %p365 = scmp.eq.s32.totalorder %s21, 1
      %p366 = por %p364, %p365
      %p367 = scmp.ne.s32.totalorder %s359, %s362
      %p368 = scmp.eq.s32.totalorder %s21, 0
      %p369 = por %p367, %p368
      %p370 = scmp.ne.s32.totalorder %s359, %s362
      %p371 = scmp.eq.s32.totalorder %s26, 1
      %p372 = por %p370, %p371
      %p373 = scmp.ne.s32.totalorder %s362, %s363
      %p374 = scmp.eq.s32.totalorder %s26, 0
      %p375 = por %p373, %p374
      %p376 = scmp.ne.s32.totalorder %s362, %s363
      %p377 = scmp.eq.s32.totalorder %s27, 1
      %p378 = por %p376, %p377
      %p380 = scmp.ne.s32.totalorder %s363, %s379
      %p381 = scmp.eq.s32.totalorder %s27, 0
      %p382 = por %p380, %p381
      %s384 = sadd.s32 %s383, 1
      %p387 = scmp.eq.s32.totalorder %s21, 1
      %p388 = scmp.ne.s32.totalorder %s383, %s385
      %p389 = scmp.eq.s32.totalorder %s21, 0
      %p390 = por %p388, %p389
      %p391 = scmp.ne.s32.totalorder %s383, %s385
      %p392 = scmp.eq.s32.totalorder %s26, 1
      %p393 = por %p391, %p392
      %p394 = scmp.ne.s32.totalorder %s385, %s386
      %p395 = scmp.eq.s32.totalorder %s26, 0
      %p396 = por %p394, %p395
      %p397 = scmp.ne.s32.totalorder %s385, %s386
      %p398 = scmp.eq.s32.totalorder %s27, 1
      %p399 = por %p397, %p398
      %p401 = scmp.ne.s32.totalorder %s386, %s400
      %p402 = scmp.eq.s32.totalorder %s27, 0
      %p403 = por %p401, %p402
      %p404 = scmp.le.s32.totalorder 1, %s21
      %p405 = scmp.lt.s32.totalorder %s21, 3
      %p406 = pnand %p404, %p405
      %p407 = pneg %p406
      // Predicated region
      $region9: #{tpu_custom_call.1} parent=5 // pred_check
        _
      $region10: #{tpu_custom_call.1} parent=5 // pred_check_branch
        %409 = sbr.rel (%p406) target = $region12
      $region11: #{tpu_custom_call.1} parent=5 // pred_region
        %s410 = ssub.s32 %s21, 1
        // Predicated region
        $region13: #{tpu_custom_call.1} parent=11 // pred_check
          %p411 = pneg %p42
        $region14: #{tpu_custom_call.1} parent=11 // pred_check_branch
          %413 = sbr.rel (%p411) target = $region16
        $region15: #{tpu_custom_call.1} parent=11 // pred_region
          _
        $region16: #{tpu_custom_call.1} parent=11 // pred_fallthru
          _
        // Predicated region
        $region17: #{tpu_custom_call.1} parent=11 // pred_check
          %p414 = pneg %p63
        $region18: #{tpu_custom_call.1} parent=11 // pred_check_branch
          %416 = sbr.rel (%p414) target = $region20
        $region19: #{tpu_custom_call.1} parent=11 // pred_region
          _
        $region20: #{tpu_custom_call.1} parent=11 // pred_fallthru
          _
      $region12: #{tpu_custom_call.1} parent=5 // pred_fallthru
        _
      %p417 = scmp.lt.s32.totalorder %s21, 2
      // Predicated region
      $region21: #{tpu_custom_call.1} parent=5 // pred_check
        %p418 = pneg %p417
      $region22: #{tpu_custom_call.1} parent=5 // pred_check_branch
        %420 = sbr.rel (%p418) target = $region24
      $region23: #{tpu_custom_call.1} parent=5 // pred_region
        // Predicated region
        $region25: #{tpu_custom_call.1} parent=23 // pred_check
          %p421 = pneg %p83
        $region26: #{tpu_custom_call.1} parent=23 // pred_check_branch
          %423 = sbr.rel (%p421) target = $region28
        $region27: #{tpu_custom_call.1} parent=23 // pred_region
          %p424 = scmp.lt.s32.totalorder %s21, 1
          %s425 = scalar_select %p424, %s21, 1
          %s426 = smul.addr %s425, 4
          %s427 = smul.addr %s426, 4
          %s428 = scalar_lea.vmem %s2, %s427
        $region28: #{tpu_custom_call.1} parent=23 // pred_fallthru
          _
        // Predicated region
        $region29: #{tpu_custom_call.1} parent=23 // pred_check
          %p429 = pneg %p109
        $region30: #{tpu_custom_call.1} parent=23 // pred_check_branch
          %431 = sbr.rel (%p429) target = $region32
        $region31: #{tpu_custom_call.1} parent=23 // pred_region
          %p432 = scmp.lt.s32.totalorder %s21, 1
          %s433 = scalar_select %p432, %s21, 1
          %s434 = scalar_lea.vmem %s3, %s433
        $region32: #{tpu_custom_call.1} parent=23 // pred_fallthru
          _
        // Predicated region
        $region33: #{tpu_custom_call.1} parent=23 // pred_check
          %p435 = pneg %p135
        $region34: #{tpu_custom_call.1} parent=23 // pred_check_branch
          %437 = sbr.rel (%p435) target = $region36
        $region35: #{tpu_custom_call.1} parent=23 // pred_region
          %p438 = scmp.lt.s32.totalorder %s21, 1
          %s439 = scalar_select %p438, %s21, 1
          %s440 = smul.addr %s439, 4
          %s441 = smul.addr %s440, 4
          %s442 = scalar_lea.vmem %s4, %s441
        $region36: #{tpu_custom_call.1} parent=23 // pred_fallthru
          _
        // Predicated region
        $region37: #{tpu_custom_call.1} parent=23 // pred_check
          %p443 = pneg %p161
        $region38: #{tpu_custom_call.1} parent=23 // pred_check_branch
          %445 = sbr.rel (%p443) target = $region40
        $region39: #{tpu_custom_call.1} parent=23 // pred_region
          %p446 = scmp.lt.s32.totalorder %s21, 1
          %s447 = scalar_select %p446, %s21, 1
          %s448 = scalar_lea.vmem %s5, %s447
        $region40: #{tpu_custom_call.1} parent=23 // pred_fallthru
          _
        // Predicated region
        $region41: #{tpu_custom_call.1} parent=23 // pred_check
          %p449 = pneg %p187
        $region42: #{tpu_custom_call.1} parent=23 // pred_check_branch
          %451 = sbr.rel (%p449) target = $region44
        $region43: #{tpu_custom_call.1} parent=23 // pred_region
          %p452 = scmp.lt.s32.totalorder %s21, 1
          %s453 = scalar_select %p452, %s21, 1
          %s454 = scalar_lea.vmem %s6, %s453
        $region44: #{tpu_custom_call.1} parent=23 // pred_fallthru
          _
        // Predicated region
        $region45: #{tpu_custom_call.1} parent=23 // pred_check
          %p455 = pneg %p213
        $region46: #{tpu_custom_call.1} parent=23 // pred_check_branch
          %457 = sbr.rel (%p455) target = $region48
        $region47: #{tpu_custom_call.1} parent=23 // pred_region
          %p458 = scmp.lt.s32.totalorder %s21, 1
          %s459 = scalar_select %p458, %s21, 1
          %s460 = scalar_lea.vmem %s7, %s459
        $region48: #{tpu_custom_call.1} parent=23 // pred_fallthru
          _
        // Predicated region
        $region49: #{tpu_custom_call.1} parent=23 // pred_check
          %p461 = pneg %p239
        $region50: #{tpu_custom_call.1} parent=23 // pred_check_branch
          %463 = sbr.rel (%p461) target = $region52
        $region51: #{tpu_custom_call.1} parent=23 // pred_region
          %p464 = scmp.lt.s32.totalorder %s21, 1
          %s465 = scalar_select %p464, %s21, 1
          %s466 = smul.addr %s465, 4
          %s467 = smul.addr %s466, 4
          %s468 = scalar_lea.vmem %s8, %s467
        $region52: #{tpu_custom_call.1} parent=23 // pred_fallthru
          _
        // Predicated region
        $region53: #{tpu_custom_call.1} parent=23 // pred_check
          %p469 = pneg %p265
        $region54: #{tpu_custom_call.1} parent=23 // pred_check_branch
          %471 = sbr.rel (%p469) target = $region56
        $region55: #{tpu_custom_call.1} parent=23 // pred_region
          %p472 = scmp.lt.s32.totalorder %s21, 1
          %s473 = scalar_select %p472, %s21, 1
          %s474 = scalar_lea.vmem %s9, %s473
        $region56: #{tpu_custom_call.1} parent=23 // pred_fallthru
          _
        // Predicated region
        $region57: #{tpu_custom_call.1} parent=23 // pred_check
          %p475 = pneg %p291
        $region58: #{tpu_custom_call.1} parent=23 // pred_check_branch
          %477 = sbr.rel (%p475) target = $region60
        $region59: #{tpu_custom_call.1} parent=23 // pred_region
          %p478 = scmp.lt.s32.totalorder %s21, 1
          %s479 = scalar_select %p478, %s21, 1
          %s480 = smul.addr %s479, 16
          %s481 = smul.addr %s480, 4
          %s482 = scalar_lea.vmem %s10, %s481
        $region60: #{tpu_custom_call.1} parent=23 // pred_fallthru
          _
        // Predicated region
        $region61: #{tpu_custom_call.1} parent=23 // pred_check
          %p483 = pneg %p317
        $region62: #{tpu_custom_call.1} parent=23 // pred_check_branch
          %485 = sbr.rel (%p483) target = $region64
        $region63: #{tpu_custom_call.1} parent=23 // pred_region
          %p486 = scmp.lt.s32.totalorder %s21, 1
          %s487 = scalar_select %p486, %s21, 1
          %s488 = scalar_lea.vmem %s11, %s487
        $region64: #{tpu_custom_call.1} parent=23 // pred_fallthru
          _
        // Predicated region
        $region65: #{tpu_custom_call.1} parent=23 // pred_check
          %p489 = pneg %p343
        $region66: #{tpu_custom_call.1} parent=23 // pred_check_branch
          %491 = sbr.rel (%p489) target = $region68
        $region67: #{tpu_custom_call.1} parent=23 // pred_region
          %p492 = scmp.lt.s32.totalorder %s21, 1
          %s493 = scalar_select %p492, %s21, 1
          %s494 = scalar_lea.vmem %s12, %s493
        $region68: #{tpu_custom_call.1} parent=23 // pred_fallthru
          _
        // Predicated region
        $region69: #{tpu_custom_call.1} parent=23 // pred_check
          %p495 = pneg %p369
        $region70: #{tpu_custom_call.1} parent=23 // pred_check_branch
          %497 = sbr.rel (%p495) target = $region72
        $region71: #{tpu_custom_call.1} parent=23 // pred_region
          %p498 = scmp.lt.s32.totalorder %s21, 1
          %s499 = scalar_select %p498, %s21, 1
          %s500 = scalar_lea.vmem %s13, %s499
        $region72: #{tpu_custom_call.1} parent=23 // pred_fallthru
          _
      $region24: #{tpu_custom_call.1} parent=5 // pred_fallthru
        _
      %p501 = scmp.le.s32.totalorder 1, %s21
      %p502 = scmp.lt.s32.totalorder %s21, 3
      %p503 = pnand %p501, %p502
      %p504 = pneg %p503
      // Predicated region
      $region73: #{tpu_custom_call.1} parent=5 // pred_check
        _
      $region74: #{tpu_custom_call.1} parent=5 // pred_check_branch
        %506 = sbr.rel (%p503) target = $region76
      $region75: #{tpu_custom_call.1} parent=5 // pred_region
        %s507 = ssub.s32 %s21, 1
        %p508 = pneg %p42
        %p509 = pneg %p39
        %p510 = pneg %p63
        %p511 = pneg %p60
        %p512 = scmp.lt.s32.totalorder %s26, 1
        %s513 = scalar_select %p512, %s26, 1
        %s514 = smul.addr %s513, 4
        %s515 = smul.addr %s514, 4
        %s516 = scalar_lea.vmem %s2, %s515
        %p517 = pneg %p89
        %p518 = pneg %p86
        %p519 = scmp.lt.s32.totalorder %s26, 1
        %s520 = scalar_select %p519, %s26, 1
        %s521 = scalar_lea.vmem %s3, %s520
        %p522 = pneg %p115
        %p523 = pneg %p112
        %p524 = scmp.lt.s32.totalorder %s26, 1
        %s525 = scalar_select %p524, %s26, 1
        %s526 = smul.addr %s525, 4
        %s527 = smul.addr %s526, 4
        %s528 = scalar_lea.vmem %s4, %s527
        %p529 = pneg %p141
        %p530 = pneg %p138
        %p531 = scmp.lt.s32.totalorder %s26, 1
        %s532 = scalar_select %p531, %s26, 1
        %s533 = scalar_lea.vmem %s5, %s532
        %p534 = pneg %p167
        %p535 = pneg %p164
        %p536 = scmp.lt.s32.totalorder %s26, 1
        %s537 = scalar_select %p536, %s26, 1
        %s538 = scalar_lea.vmem %s6, %s537
        %p539 = pneg %p193
        %p540 = pneg %p190
        %p541 = scmp.lt.s32.totalorder %s26, 1
        %s542 = scalar_select %p541, %s26, 1
        %s543 = scalar_lea.vmem %s7, %s542
        %p544 = pneg %p219
        %p545 = pneg %p216
        %p546 = scmp.lt.s32.totalorder %s26, 1
        %s547 = scalar_select %p546, %s26, 1
        %s548 = smul.addr %s547, 4
        %s549 = smul.addr %s548, 4
        %s550 = scalar_lea.vmem %s8, %s549
        %p551 = pneg %p245
        %p552 = pneg %p242
        %p553 = scmp.lt.s32.totalorder %s26, 1
        %s554 = scalar_select %p553, %s26, 1
        %s555 = scalar_lea.vmem %s9, %s554
        %p556 = pneg %p271
        %p557 = pneg %p268
        %p558 = scmp.lt.s32.totalorder %s26, 1
        %s559 = scalar_select %p558, %s26, 1
        %s560 = smul.addr %s559, 16
        %s561 = smul.addr %s560, 4
        %s562 = scalar_lea.vmem %s10, %s561
        %p563 = pneg %p297
        %p564 = pneg %p294
        %p565 = scmp.lt.s32.totalorder %s26, 1
        %s566 = scalar_select %p565, %s26, 1
        %s567 = scalar_lea.vmem %s11, %s566
        %p568 = pneg %p323
        %p569 = pneg %p320
        %p570 = scmp.lt.s32.totalorder %s26, 1
        %s571 = scalar_select %p570, %s26, 1
        %s572 = scalar_lea.vmem %s12, %s571
        %p573 = pneg %p349
        %p574 = pneg %p346
        %p575 = scmp.lt.s32.totalorder %s26, 1
        %s576 = scalar_select %p575, %s26, 1
        %s577 = scalar_lea.vmem %s13, %s576
        %p578 = pneg %p375
        %p579 = pneg %p372
        %p580 = pneg %p396
        %p581 = pneg %p393
        %p582 = scmp.lt.s32.totalorder %s26, 1
        %s583 = scalar_select %p582, %s26, 1
        %s584 = smul.addr %s583, 4
        %s585 = smul.addr %s584, 4
        %s586 = scalar_lea.vmem %s2, %s585
        %p587 = scmp.lt.s32.totalorder %s26, 1
        %s588 = scalar_select %p587, %s26, 1
        %s589 = scalar_lea.vmem %s3, %s588
        %p590 = scmp.lt.s32.totalorder %s26, 1
        %s591 = scalar_select %p590, %s26, 1
        %s592 = smul.addr %s591, 4
        %s593 = smul.addr %s592, 4
        %s594 = scalar_lea.vmem %s4, %s593
        %p595 = scmp.lt.s32.totalorder %s26, 1
        %s596 = scalar_select %p595, %s26, 1
        %s597 = scalar_lea.vmem %s5, %s596
        %p598 = scmp.lt.s32.totalorder %s26, 1
        %s599 = scalar_select %p598, %s26, 1
        %s600 = scalar_lea.vmem %s6, %s599
        %p601 = scmp.lt.s32.totalorder %s26, 1
        %s602 = scalar_select %p601, %s26, 1
        %s603 = scalar_lea.vmem %s7, %s602
        %p604 = scmp.lt.s32.totalorder %s26, 1
        %s605 = scalar_select %p604, %s26, 1
        %s606 = smul.addr %s605, 4
        %s607 = smul.addr %s606, 4
        %s608 = scalar_lea.vmem %s8, %s607
        %p609 = scmp.lt.s32.totalorder %s26, 1
        %s610 = scalar_select %p609, %s26, 1
        %s611 = scalar_lea.vmem %s9, %s610
        %p612 = scmp.lt.s32.totalorder %s26, 1
        %s613 = scalar_select %p612, %s26, 1
        %s614 = smul.addr %s613, 16
        %s615 = smul.addr %s614, 4
        %s616 = scalar_lea.vmem %s10, %s615
        %p617 = scmp.lt.s32.totalorder %s26, 1
        %s618 = scalar_select %p617, %s26, 1
        %s619 = scalar_lea.vmem %s11, %s618
        %p620 = scmp.lt.s32.totalorder %s26, 1
        %s621 = scalar_select %p620, %s26, 1
        %s622 = scalar_lea.vmem %s12, %s621
        %p623 = scmp.lt.s32.totalorder %s26, 1
        %s624 = scalar_select %p623, %s26, 1
        %s625 = scalar_lea.vmem %s13, %s624
        %p627 = scmp.eq.s32.totalorder %s26, 0
        // Predicated region
        $region77: #{tpu_custom_call.1} parent=75 // pred_check
          %p628 = pneg %p627
        $region78: #{tpu_custom_call.1} parent=75 // pred_check_branch
          %630 = sbr.rel (%p628) target = $region80
        $region79: #{tpu_custom_call.1} parent=75 // pred_region
          %v631 = vld [vmem:[%s0] sm:$0xff]
          %v632 = vld [vmem:[%s0 + $0x8] sm:$0xff]
          %vm633 = vcmask 261120
          %634 = vst.msk [vmem:[#allocation4] sm:$0xff] %vm633, %v631
          %635 = vst.msk [vmem:[#allocation4 + $0x8] sm:$0xff] %vm633, %v632
          %v636 = vlaneseq
          %v637 = vshrl.u32 %v636, 7
          %v638 = vlaneseq
          %v639 = vand.u32 %v638, 127
          %vm640 = vcmp.gt.s32.totalorder %v639, %v637
          %v641 = vld [vmem:[%s1] sm:$0x3]
          %vm642 = vcmp.gt.f32.partialorder %v641, 0.5
          %v643 = vsel %vm642, 1, 0
          %v644 = vrot.slane %v643, 1
          %vm645 = vcmp.ne.s32.totalorder %v644, 0
          %v646 = vsel %vm640, 1, 0
          %vm647 = vcmp.eq.s32.totalorder %v646, 1
          %v648 = vsel %vm645, 1, 0
          %v649 = vperm.slane %v643, 0
          %v650 = vperm.slane %v648, 0
          %vm651 = vcmp.eq.s32.totalorder %v649, 1
          %vm652 = vcmp.eq.s32.totalorder %v650, 1
          %vm653 = vmor %vm647, %vm651
          %vm654 = vmor %vm647, %vm652
          %v655 = vsel %vm653, 1.0, 0.0
          %v656 = vsel %vm654, 1.0, 0.0
          %v657 = vmul.f32 %v655, -1e+30
          %v658 = vmul.f32 %v656, -1e+30
          %vm659 = vcmask 64512
          %660 = vst.msk [vmem:[#allocation2] sm:$0xff] %vm659, %v657
          %661 = vst.msk [vmem:[#allocation2 + $0x8] sm:$0xff] %vm659, %v658
          %v662 = vsel %vm659, %v655, inf
          %663 = vmin.xlane.f32.xlu0 %v662
          %v664 = vpop.xlane.xlu0 %663
          %v665 = vsel %vm659, %v656, inf
          %666 = vmin.xlane.f32.xlu0 %v665
          %v667 = vpop.xlane.xlu0 %666
          %vm668 = vcmask 7168
          %669 = vst.msk [vmem:[#allocation3] sm:$0xff] %vm668, %v664
          %670 = vst.msk [vmem:[#allocation3 + $0x8] sm:$0xff] %vm668, %v667
        $region80: #{tpu_custom_call.1} parent=75 // pred_fallthru
          _
        %v671 = vld [vmem:[#allocation4] sm:$0xff]
        %v672 = vld [vmem:[#allocation4 + $0x8] sm:$0xff]
        %v673 = vpack.c.bf16 %v672, %v671
        %v674 = vld [vmem:[%s586] sm:$0xf]
        %v675 = vld [vmem:[%s586 + $0x4] sm:$0xf]
        %v676 = vld [vmem:[%s586 + $0x8] sm:$0xf]
        %v677 = vld [vmem:[%s586 + $0xc] sm:$0xf]
        %v678 = vld [vmem:[%s589] sm:$0x1]
        %v680 = vperm.slane %v678, 0
        %v686 = vunpack.c.l.b16 %v674
        %v687 = vunpack.c.l.b16 %v675
        %v688 = vunpack.c.l.b16 %v676
        %v689 = vunpack.c.l.b16 %v677
        %v690 = vpack.c.b16 %v687, %v686
        %v691 = vpack.c.b16 %v689, %v688
        %vm694 = vcmask 261120
        %v696 = vsel %vm694, %v673, 0
        %698 = vmatpush.bf16.msra.mxu0 0
        %699 = vmatpush.bf16.msra.mxu0 0
        %700 = vmatpush.bf16.msra.mxu0 0
        %701 = vmatpush.bf16.msra.mxu0 0
        %702 = vmatpush.bf16.msra.mxu0 0
        %703 = vmatpush.bf16.msra.mxu0 0
        %704 = vmatpush.bf16.msra.mxu0 %v691
        %705 = vmatpush.bf16.msra.mxu0 %v690
        %706 = vmatmul.bf16.gmra.mxu0 %v696
        %v707 = vpop.f32.mrf.mxu0
        %v708 = vadd.f32 %v680, %v707
        %v709 = vpop.f32.mrf.mxu0
        %v710 = vadd.f32 %v680, %v709
        %711 = vdwg.mxu0
        %714 = vrot.lane.b32.xlu0 %v708, 120
        %v715 = vpop.permute.xlu0 %714
        %716 = vrot.lane.b32.xlu0 %v710, 120
        %v717 = vpop.permute.xlu0 %716
        %720 = vrot.lane.b32.xlu0 %v708, 112
        %v721 = vpop.permute.xlu0 %720
        %722 = vrot.lane.b32.xlu0 %v710, 112
        %v723 = vpop.permute.xlu0 %722
        %726 = vrot.lane.b32.xlu0 %v708, 104
        %v727 = vpop.permute.xlu0 %726
        %728 = vrot.lane.b32.xlu0 %v710, 104
        %v729 = vpop.permute.xlu0 %728
        %732 = vrot.lane.b32.xlu0 %v708, 96
        %v733 = vpop.permute.xlu0 %732
        %734 = vrot.lane.b32.xlu0 %v710, 96
        %v735 = vpop.permute.xlu0 %734
        %738 = vrot.lane.b32.xlu0 %v708, 88
        %v739 = vpop.permute.xlu0 %738
        %740 = vrot.lane.b32.xlu0 %v710, 88
        %v741 = vpop.permute.xlu0 %740
        %744 = vrot.lane.b32.xlu0 %v708, 80
        %v745 = vpop.permute.xlu0 %744
        %746 = vrot.lane.b32.xlu0 %v710, 80
        %v747 = vpop.permute.xlu0 %746
        %750 = vrot.lane.b32.xlu0 %v708, 72
        %v751 = vpop.permute.xlu0 %750
        %752 = vrot.lane.b32.xlu0 %v710, 72
        %v753 = vpop.permute.xlu0 %752
        %756 = vrot.lane.b32.xlu0 %v708, 64
        %v757 = vpop.permute.xlu0 %756
        %758 = vrot.lane.b32.xlu0 %v710, 64
        %v759 = vpop.permute.xlu0 %758
        %762 = vrot.lane.b32.xlu0 %v708, 56
        %v763 = vpop.permute.xlu0 %762
        %764 = vrot.lane.b32.xlu0 %v710, 56
        %v765 = vpop.permute.xlu0 %764
        %768 = vrot.lane.b32.xlu0 %v708, 48
        %v769 = vpop.permute.xlu0 %768
        %770 = vrot.lane.b32.xlu0 %v710, 48
        %v771 = vpop.permute.xlu0 %770
        %774 = vrot.lane.b32.xlu0 %v708, 40
        %v775 = vpop.permute.xlu0 %774
        %776 = vrot.lane.b32.xlu0 %v710, 40
        %v777 = vpop.permute.xlu0 %776
        %v780 = vrot.slane %v721, 4
        %vm781 = vcmask 1047556
        %v782 = vsel %vm781, %v780, %v708
        %v783 = vrot.slane %v708, 4
        %v784 = vsel %vm781, %v721, %v783
        %v786 = vunpack.c.l.s4 1983009808
        %v787 = vunpack.c.0.s8 %v786
        %v788 = vperm.slane %v782, %v787
        %v790 = vunpack.c.l.s4 1983009808
        %v791 = vunpack.c.0.s8 %v790
        %v792 = vperm.slane %v784, %v791
        %v793 = vrot.slane %v727, 4
        %v794 = vsel %vm781, %v793, %v715
        %v795 = vrot.slane %v715, 4
        %v796 = vsel %vm781, %v727, %v795
        %v798 = vunpack.c.l.s4 1983009808
        %v799 = vunpack.c.0.s8 %v798
        %v800 = vperm.slane %v794, %v799
        %v802 = vunpack.c.l.s4 1983009808
        %v803 = vunpack.c.0.s8 %v802
        %v804 = vperm.slane %v796, %v803
        %v805 = vrot.slane %v745, 4
        %v806 = vsel %vm781, %v805, %v733
        %v807 = vrot.slane %v733, 4
        %v808 = vsel %vm781, %v745, %v807
        %v810 = vunpack.c.l.s4 1983009808
        %v811 = vunpack.c.0.s8 %v810
        %v812 = vperm.slane %v806, %v811
        %v814 = vunpack.c.l.s4 1983009808
        %v815 = vunpack.c.0.s8 %v814
        %v816 = vperm.slane %v808, %v815
        %v817 = vrot.slane %v751, 4
        %v818 = vsel %vm781, %v817, %v739
        %v819 = vrot.slane %v739, 4
        %v820 = vsel %vm781, %v751, %v819
        %v822 = vunpack.c.l.s4 1983009808
        %v823 = vunpack.c.0.s8 %v822
        %v824 = vperm.slane %v818, %v823
        %v826 = vunpack.c.l.s4 1983009808
        %v827 = vunpack.c.0.s8 %v826
        %v828 = vperm.slane %v820, %v827
        %v829 = vrot.slane %v800, 4
        %v830 = vsel %vm781, %v829, %v788
        %v831 = vrot.slane %v788, 4
        %v832 = vsel %vm781, %v800, %v831
        %v834 = vunpack.c.l.s4 1934713408
        %v835 = vunpack.c.0.s8 %v834
        %v836 = vperm.slane %v830, %v835
        %v838 = vunpack.c.l.s4 1934713408
        %v839 = vunpack.c.0.s8 %v838
        %v840 = vperm.slane %v832, %v839
        %v841 = vrot.slane %v804, 4
        %v842 = vsel %vm781, %v841, %v792
        %v843 = vrot.slane %v792, 4
        %v844 = vsel %vm781, %v804, %v843
        %v846 = vunpack.c.l.s4 1934713408
        %v847 = vunpack.c.0.s8 %v846
        %v848 = vperm.slane %v842, %v847
        %v850 = vunpack.c.l.s4 1934713408
        %v851 = vunpack.c.0.s8 %v850
        %v852 = vperm.slane %v844, %v851
        %v853 = vrot.slane %v824, 4
        %v854 = vsel %vm781, %v853, %v812
        %v855 = vrot.slane %v812, 4
        %v856 = vsel %vm781, %v824, %v855
        %v858 = vunpack.c.l.s4 1934713408
        %v859 = vunpack.c.0.s8 %v858
        %v860 = vperm.slane %v854, %v859
        %v862 = vunpack.c.l.s4 1934713408
        %v863 = vunpack.c.0.s8 %v862
        %v864 = vperm.slane %v856, %v863
        %v865 = vrot.slane %v828, 4
        %v866 = vsel %vm781, %v865, %v816
        %v867 = vrot.slane %v816, 4
        %v868 = vsel %vm781, %v828, %v867
        %v870 = vunpack.c.l.s4 1934713408
        %v871 = vunpack.c.0.s8 %v870
        %v872 = vperm.slane %v866, %v871
        %v874 = vunpack.c.l.s4 1934713408
        %v875 = vunpack.c.0.s8 %v874
        %v876 = vperm.slane %v868, %v875
        %v877 = vrot.slane %v860, 4
        %v878 = vsel %vm781, %v877, %v836
        %v879 = vrot.slane %v836, 4
        %v880 = vsel %vm781, %v860, %v879
        %v881 = vrot.slane %v864, 4
        %v882 = vsel %vm781, %v881, %v840
        %v883 = vrot.slane %v840, 4
        %v884 = vsel %vm781, %v864, %v883
        %v885 = vrot.slane %v872, 4
        %v886 = vsel %vm781, %v885, %v848
        %v887 = vrot.slane %v848, 4
        %v888 = vsel %vm781, %v872, %v887
        %v889 = vrot.slane %v876, 4
        %v890 = vsel %vm781, %v889, %v852
        %v891 = vrot.slane %v852, 4
        %v892 = vsel %vm781, %v876, %v891
        %v893 = vrot.slane %v769, 4
        %v894 = vsel %vm781, %v893, %v757
        %v895 = vrot.slane %v757, 4
        %v896 = vsel %vm781, %v769, %v895
        %v898 = vunpack.c.l.s4 1983009808
        %v899 = vunpack.c.0.s8 %v898
        %v900 = vperm.slane %v894, %v899
        %v902 = vunpack.c.l.s4 1983009808
        %v903 = vunpack.c.0.s8 %v902
        %v904 = vperm.slane %v896, %v903
        %v905 = vrot.slane %v775, 4
        %v906 = vsel %vm781, %v905, %v763
        %v907 = vrot.slane %v763, 4
        %v908 = vsel %vm781, %v775, %v907
        %v910 = vunpack.c.l.s4 1983009808
        %v911 = vunpack.c.0.s8 %v910
        %v912 = vperm.slane %v906, %v911
        %v914 = vunpack.c.l.s4 1983009808
        %v915 = vunpack.c.0.s8 %v914
        %v916 = vperm.slane %v908, %v915
        %v917 = vrot.slane %v912, 4
        %v918 = vsel %vm781, %v917, %v900
        %v919 = vrot.slane %v900, 4
        %v920 = vsel %vm781, %v912, %v919
        %v922 = vunpack.c.l.s4 1934713408
        %v923 = vunpack.c.0.s8 %v922
        %v924 = vperm.slane %v918, %v923
        %v926 = vunpack.c.l.s4 1934713408
        %v927 = vunpack.c.0.s8 %v926
        %v928 = vperm.slane %v920, %v927
        %v929 = vrot.slane %v916, 4
        %v930 = vsel %vm781, %v929, %v904
        %v931 = vrot.slane %v904, 4
        %v932 = vsel %vm781, %v916, %v931
        %v934 = vunpack.c.l.s4 1934713408
        %v935 = vunpack.c.0.s8 %v934
        %v936 = vperm.slane %v930, %v935
        %v938 = vunpack.c.l.s4 1934713408
        %v939 = vunpack.c.0.s8 %v938
        %v940 = vperm.slane %v932, %v939
        %v941 = vrot.slane %v924, 4
        %v942 = vsel %vm781, 0.0, %v941
        %v943 = vrot.slane %v928, 4
        %v944 = vsel %vm781, 0.0, %v943
        %v945 = vrot.slane %v936, 4
        %v946 = vsel %vm781, 0.0, %v945
        %v947 = vrot.slane %v940, 4
        %v948 = vsel %vm781, 0.0, %v947
        %v949 = vrot.slane %v723, 4
        %v950 = vsel %vm781, %v949, %v710
        %v951 = vrot.slane %v710, 4
        %v952 = vsel %vm781, %v723, %v951
        %v954 = vunpack.c.l.s4 1983009808
        %v955 = vunpack.c.0.s8 %v954
        %v956 = vperm.slane %v950, %v955
        %v958 = vunpack.c.l.s4 1983009808
        %v959 = vunpack.c.0.s8 %v958
        %v960 = vperm.slane %v952, %v959
        %v961 = vrot.slane %v729, 4
        %v962 = vsel %vm781, %v961, %v717
        %v963 = vrot.slane %v717, 4
        %v964 = vsel %vm781, %v729, %v963
        %v966 = vunpack.c.l.s4 1983009808
        %v967 = vunpack.c.0.s8 %v966
        %v968 = vperm.slane %v962, %v967
        %v970 = vunpack.c.l.s4 1983009808
        %v971 = vunpack.c.0.s8 %v970
        %v972 = vperm.slane %v964, %v971
        %v973 = vrot.slane %v747, 4
        %v974 = vsel %vm781, %v973, %v735
        %v975 = vrot.slane %v735, 4
        %v976 = vsel %vm781, %v747, %v975
        %v978 = vunpack.c.l.s4 1983009808
        %v979 = vunpack.c.0.s8 %v978
        %v980 = vperm.slane %v974, %v979
        %v982 = vunpack.c.l.s4 1983009808
        %v983 = vunpack.c.0.s8 %v982
        %v984 = vperm.slane %v976, %v983
        %v985 = vrot.slane %v753, 4
        %v986 = vsel %vm781, %v985, %v741
        %v987 = vrot.slane %v741, 4
        %v988 = vsel %vm781, %v753, %v987
        %v990 = vunpack.c.l.s4 1983009808
        %v991 = vunpack.c.0.s8 %v990
        %v992 = vperm.slane %v986, %v991
        %v994 = vunpack.c.l.s4 1983009808
        %v995 = vunpack.c.0.s8 %v994
        %v996 = vperm.slane %v988, %v995
        %v997 = vrot.slane %v968, 4
        %v998 = vsel %vm781, %v997, %v956
        %v999 = vrot.slane %v956, 4
        %v1000 = vsel %vm781, %v968, %v999
        %v1002 = vunpack.c.l.s4 1934713408
        %v1003 = vunpack.c.0.s8 %v1002
        %v1004 = vperm.slane %v998, %v1003
        %v1006 = vunpack.c.l.s4 1934713408
        %v1007 = vunpack.c.0.s8 %v1006
        %v1008 = vperm.slane %v1000, %v1007
        %v1009 = vrot.slane %v972, 4
        %v1010 = vsel %vm781, %v1009, %v960
        %v1011 = vrot.slane %v960, 4
        %v1012 = vsel %vm781, %v972, %v1011
        %v1014 = vunpack.c.l.s4 1934713408
        %v1015 = vunpack.c.0.s8 %v1014
        %v1016 = vperm.slane %v1010, %v1015
        %v1018 = vunpack.c.l.s4 1934713408
        %v1019 = vunpack.c.0.s8 %v1018
        %v1020 = vperm.slane %v1012, %v1019
        %v1021 = vrot.slane %v992, 4
        %v1022 = vsel %vm781, %v1021, %v980
        %v1023 = vrot.slane %v980, 4
        %v1024 = vsel %vm781, %v992, %v1023
        %v1026 = vunpack.c.l.s4 1934713408
        %v1027 = vunpack.c.0.s8 %v1026
        %v1028 = vperm.slane %v1022, %v1027
        %v1030 = vunpack.c.l.s4 1934713408
        %v1031 = vunpack.c.0.s8 %v1030
        %v1032 = vperm.slane %v1024, %v1031
        %v1033 = vrot.slane %v996, 4
        %v1034 = vsel %vm781, %v1033, %v984
        %v1035 = vrot.slane %v984, 4
        %v1036 = vsel %vm781, %v996, %v1035
        %v1038 = vunpack.c.l.s4 1934713408
        %v1039 = vunpack.c.0.s8 %v1038
        %v1040 = vperm.slane %v1034, %v1039
        %v1042 = vunpack.c.l.s4 1934713408
        %v1043 = vunpack.c.0.s8 %v1042
        %v1044 = vperm.slane %v1036, %v1043
        %v1045 = vrot.slane %v1028, 4
        %v1046 = vsel %vm781, %v1045, %v1004
        %v1047 = vrot.slane %v1004, 4
        %v1048 = vsel %vm781, %v1028, %v1047
        %v1049 = vrot.slane %v1032, 4
        %v1050 = vsel %vm781, %v1049, %v1008
        %v1051 = vrot.slane %v1008, 4
        %v1052 = vsel %vm781, %v1032, %v1051
        %v1053 = vrot.slane %v1040, 4
        %v1054 = vsel %vm781, %v1053, %v1016
        %v1055 = vrot.slane %v1016, 4
        %v1056 = vsel %vm781, %v1040, %v1055
        %v1057 = vrot.slane %v1044, 4
        %v1058 = vsel %vm781, %v1057, %v1020
        %v1059 = vrot.slane %v1020, 4
        %v1060 = vsel %vm781, %v1044, %v1059
        %v1061 = vrot.slane %v771, 4
        %v1062 = vsel %vm781, %v1061, %v759
        %v1063 = vrot.slane %v759, 4
        %v1064 = vsel %vm781, %v771, %v1063
        %v1066 = vunpack.c.l.s4 1983009808
        %v1067 = vunpack.c.0.s8 %v1066
        %v1068 = vperm.slane %v1062, %v1067
        %v1070 = vunpack.c.l.s4 1983009808
        %v1071 = vunpack.c.0.s8 %v1070
        %v1072 = vperm.slane %v1064, %v1071
        %v1073 = vrot.slane %v777, 4
        %v1074 = vsel %vm781, %v1073, %v765
        %v1075 = vrot.slane %v765, 4
        %v1076 = vsel %vm781, %v777, %v1075
        %v1078 = vunpack.c.l.s4 1983009808
        %v1079 = vunpack.c.0.s8 %v1078
        %v1080 = vperm.slane %v1074, %v1079
        %v1082 = vunpack.c.l.s4 1983009808
        %v1083 = vunpack.c.0.s8 %v1082
        %v1084 = vperm.slane %v1076, %v1083
        %v1085 = vrot.slane %v1080, 4
        %v1086 = vsel %vm781, %v1085, %v1068
        %v1087 = vrot.slane %v1068, 4
        %v1088 = vsel %vm781, %v1080, %v1087
        %v1090 = vunpack.c.l.s4 1934713408
        %v1091 = vunpack.c.0.s8 %v1090
        %v1092 = vperm.slane %v1086, %v1091
        %v1094 = vunpack.c.l.s4 1934713408
        %v1095 = vunpack.c.0.s8 %v1094
        %v1096 = vperm.slane %v1088, %v1095
        %v1097 = vrot.slane %v1084, 4
        %v1098 = vsel %vm781, %v1097, %v1072
        %v1099 = vrot.slane %v1072, 4
        %v1100 = vsel %vm781, %v1084, %v1099
        %v1102 = vunpack.c.l.s4 1934713408
        %v1103 = vunpack.c.0.s8 %v1102
        %v1104 = vperm.slane %v1098, %v1103
        %v1106 = vunpack.c.l.s4 1934713408
        %v1107 = vunpack.c.0.s8 %v1106
        %v1108 = vperm.slane %v1100, %v1107
        %v1109 = vrot.slane %v1092, 4
        %v1110 = vsel %vm781, 0.0, %v1109
        %v1111 = vrot.slane %v1096, 4
        %v1112 = vsel %vm781, 0.0, %v1111
        %v1113 = vrot.slane %v1104, 4
        %v1114 = vsel %vm781, 0.0, %v1113
        %v1115 = vrot.slane %v1108, 4
        %v1116 = vsel %vm781, 0.0, %v1115
        %v1117 = vrot.slane %v882, 4
        %v1118 = vsel %vm781, %v1117, %v878
        %v1119 = vrot.slane %v878, 4
        %v1120 = vsel %vm781, %v882, %v1119
        %v1122 = vunpack.c.l.s4 1983009808
        %v1123 = vunpack.c.0.s8 %v1122
        %v1124 = vperm.slane %v1118, %v1123
        %v1126 = vunpack.c.l.s4 1983009808
        %v1127 = vunpack.c.0.s8 %v1126
        %v1128 = vperm.slane %v1120, %v1127
        %v1129 = vrot.slane %v884, 4
        %v1130 = vsel %vm781, %v1129, %v880
        %v1131 = vrot.slane %v880, 4
        %v1132 = vsel %vm781, %v884, %v1131
        %v1134 = vunpack.c.l.s4 1983009808
        %v1135 = vunpack.c.0.s8 %v1134
        %v1136 = vperm.slane %v1130, %v1135
        %v1138 = vunpack.c.l.s4 1983009808
        %v1139 = vunpack.c.0.s8 %v1138
        %v1140 = vperm.slane %v1132, %v1139
        %v1141 = vrot.slane %v890, 4
        %v1142 = vsel %vm781, %v1141, %v886
        %v1143 = vrot.slane %v886, 4
        %v1144 = vsel %vm781, %v890, %v1143
        %v1146 = vunpack.c.l.s4 1983009808
        %v1147 = vunpack.c.0.s8 %v1146
        %v1148 = vperm.slane %v1142, %v1147
        %v1150 = vunpack.c.l.s4 1983009808
        %v1151 = vunpack.c.0.s8 %v1150
        %v1152 = vperm.slane %v1144, %v1151
        %v1153 = vrot.slane %v892, 4
        %v1154 = vsel %vm781, %v1153, %v888
        %v1155 = vrot.slane %v888, 4
        %v1156 = vsel %vm781, %v892, %v1155
        %v1158 = vunpack.c.l.s4 1983009808
        %v1159 = vunpack.c.0.s8 %v1158
        %v1160 = vperm.slane %v1154, %v1159
        %v1162 = vunpack.c.l.s4 1983009808
        %v1163 = vunpack.c.0.s8 %v1162
        %v1164 = vperm.slane %v1156, %v1163
        %v1165 = vrot.slane %v1136, 4
        %v1166 = vsel %vm781, %v1165, %v1124
        %v1167 = vrot.slane %v1124, 4
        %v1168 = vsel %vm781, %v1136, %v1167
        %v1170 = vunpack.c.l.s4 1934713408
        %v1171 = vunpack.c.0.s8 %v1170
        %v1172 = vperm.slane %v1166, %v1171
        %v1174 = vunpack.c.l.s4 1934713408
        %v1175 = vunpack.c.0.s8 %v1174
        %v1176 = vperm.slane %v1168, %v1175
        %v1177 = vrot.slane %v1140, 4
        %v1178 = vsel %vm781, %v1177, %v1128
        %v1179 = vrot.slane %v1128, 4
        %v1180 = vsel %vm781, %v1140, %v1179
        %v1182 = vunpack.c.l.s4 1934713408
        %v1183 = vunpack.c.0.s8 %v1182
        %v1184 = vperm.slane %v1178, %v1183
        %v1186 = vunpack.c.l.s4 1934713408
        %v1187 = vunpack.c.0.s8 %v1186
        %v1188 = vperm.slane %v1180, %v1187
        %v1189 = vrot.slane %v1160, 4
        %v1190 = vsel %vm781, %v1189, %v1148
        %v1191 = vrot.slane %v1148, 4
        %v1192 = vsel %vm781, %v1160, %v1191
        %v1194 = vunpack.c.l.s4 1934713408
        %v1195 = vunpack.c.0.s8 %v1194
        %v1196 = vperm.slane %v1190, %v1195
        %v1198 = vunpack.c.l.s4 1934713408
        %v1199 = vunpack.c.0.s8 %v1198
        %v1200 = vperm.slane %v1192, %v1199
        %v1201 = vrot.slane %v1164, 4
        %v1202 = vsel %vm781, %v1201, %v1152
        %v1203 = vrot.slane %v1152, 4
        %v1204 = vsel %vm781, %v1164, %v1203
        %v1206 = vunpack.c.l.s4 1934713408
        %v1207 = vunpack.c.0.s8 %v1206
        %v1208 = vperm.slane %v1202, %v1207
        %v1210 = vunpack.c.l.s4 1934713408
        %v1211 = vunpack.c.0.s8 %v1210
        %v1212 = vperm.slane %v1204, %v1211
        %v1213 = vrot.slane %v1196, 4
        %v1214 = vsel %vm781, %v1213, %v1172
        %v1215 = vrot.slane %v1172, 4
        %v1216 = vsel %vm781, %v1196, %v1215
        %v1217 = vrot.slane %v1200, 4
        %v1218 = vsel %vm781, %v1217, %v1176
        %v1219 = vrot.slane %v1176, 4
        %v1220 = vsel %vm781, %v1200, %v1219
        %v1221 = vrot.slane %v1208, 4
        %v1222 = vsel %vm781, %v1221, %v1184
        %v1223 = vrot.slane %v1184, 4
        %v1224 = vsel %vm781, %v1208, %v1223
        %v1225 = vrot.slane %v1212, 4
        %v1226 = vsel %vm781, %v1225, %v1188
        %v1227 = vrot.slane %v1188, 4
        %v1228 = vsel %vm781, %v1212, %v1227
        %v1229 = vsel %vm781, %v943, %v924
        %v1231 = vunpack.c.l.s4 1983009808
        %v1232 = vunpack.c.0.s8 %v1231
        %v1233 = vperm.slane %v1229, %v1232
        %v1234 = vrot.slane %v944, 4
        %v1235 = vsel %vm781, %v1234, %v942
        %v1237 = vunpack.c.l.s4 1983009808
        %v1238 = vunpack.c.0.s8 %v1237
        %v1239 = vperm.slane %v1235, %v1238
        %v1240 = vsel %vm781, %v947, %v936
        %v1242 = vunpack.c.l.s4 1983009808
        %v1243 = vunpack.c.0.s8 %v1242
        %v1244 = vperm.slane %v1240, %v1243
        %v1245 = vrot.slane %v948, 4
        %v1246 = vsel %vm781, %v1245, %v946
        %v1248 = vunpack.c.l.s4 1983009808
        %v1249 = vunpack.c.0.s8 %v1248
        %v1250 = vperm.slane %v1246, %v1249
        %v1251 = vrot.slane %v1239, 4
        %v1252 = vsel %vm781, %v1251, %v1233
        %v1253 = vrot.slane %v1233, 4
        %v1254 = vsel %vm781, %v1239, %v1253
        %v1256 = vunpack.c.l.s4 1934713408
        %v1257 = vunpack.c.0.s8 %v1256
        %v1258 = vperm.slane %v1252, %v1257
        %v1260 = vunpack.c.l.s4 1934713408
        %v1261 = vunpack.c.0.s8 %v1260
        %v1262 = vperm.slane %v1254, %v1261
        %v1263 = vrot.slane %v1250, 4
        %v1264 = vsel %vm781, %v1263, %v1244
        %v1265 = vrot.slane %v1244, 4
        %v1266 = vsel %vm781, %v1250, %v1265
        %v1268 = vunpack.c.l.s4 1934713408
        %v1269 = vunpack.c.0.s8 %v1268
        %v1270 = vperm.slane %v1264, %v1269
        %v1272 = vunpack.c.l.s4 1934713408
        %v1273 = vunpack.c.0.s8 %v1272
        %v1274 = vperm.slane %v1266, %v1273
        %v1275 = vrot.slane %v1270, 4
        %v1276 = vsel %vm781, %v1275, %v1258
        %v1277 = vrot.slane %v1258, 4
        %v1278 = vsel %vm781, %v1270, %v1277
        %v1279 = vrot.slane %v1274, 4
        %v1280 = vsel %vm781, %v1279, %v1262
        %v1281 = vrot.slane %v1262, 4
        %v1282 = vsel %vm781, %v1274, %v1281
        %v1283 = vrot.slane %v1050, 4
        %v1284 = vsel %vm781, %v1283, %v1046
        %v1285 = vrot.slane %v1046, 4
        %v1286 = vsel %vm781, %v1050, %v1285
        %v1288 = vunpack.c.l.s4 1983009808
        %v1289 = vunpack.c.0.s8 %v1288
        %v1290 = vperm.slane %v1284, %v1289
        %v1292 = vunpack.c.l.s4 1983009808
        %v1293 = vunpack.c.0.s8 %v1292
        %v1294 = vperm.slane %v1286, %v1293
        %v1295 = vrot.slane %v1052, 4
        %v1296 = vsel %vm781, %v1295, %v1048
        %v1297 = vrot.slane %v1048, 4
        %v1298 = vsel %vm781, %v1052, %v1297
        %v1300 = vunpack.c.l.s4 1983009808
        %v1301 = vunpack.c.0.s8 %v1300
        %v1302 = vperm.slane %v1296, %v1301
        %v1304 = vunpack.c.l.s4 1983009808
        %v1305 = vunpack.c.0.s8 %v1304
        %v1306 = vperm.slane %v1298, %v1305
        %v1307 = vrot.slane %v1058, 4
        %v1308 = vsel %vm781, %v1307, %v1054
        %v1309 = vrot.slane %v1054, 4
        %v1310 = vsel %vm781, %v1058, %v1309
        %v1312 = vunpack.c.l.s4 1983009808
        %v1313 = vunpack.c.0.s8 %v1312
        %v1314 = vperm.slane %v1308, %v1313
        %v1316 = vunpack.c.l.s4 1983009808
        %v1317 = vunpack.c.0.s8 %v1316
        %v1318 = vperm.slane %v1310, %v1317
        %v1319 = vrot.slane %v1060, 4
        %v1320 = vsel %vm781, %v1319, %v1056
        %v1321 = vrot.slane %v1056, 4
        %v1322 = vsel %vm781, %v1060, %v1321
        %v1324 = vunpack.c.l.s4 1983009808
        %v1325 = vunpack.c.0.s8 %v1324
        %v1326 = vperm.slane %v1320, %v1325
        %v1328 = vunpack.c.l.s4 1983009808
        %v1329 = vunpack.c.0.s8 %v1328
        %v1330 = vperm.slane %v1322, %v1329
        %v1331 = vrot.slane %v1302, 4
        %v1332 = vsel %vm781, %v1331, %v1290
        %v1333 = vrot.slane %v1290, 4
        %v1334 = vsel %vm781, %v1302, %v1333
        %v1336 = vunpack.c.l.s4 1934713408
        %v1337 = vunpack.c.0.s8 %v1336
        %v1338 = vperm.slane %v1332, %v1337
        %v1340 = vunpack.c.l.s4 1934713408
        %v1341 = vunpack.c.0.s8 %v1340
        %v1342 = vperm.slane %v1334, %v1341
        %v1343 = vrot.slane %v1306, 4
        %v1344 = vsel %vm781, %v1343, %v1294
        %v1345 = vrot.slane %v1294, 4
        %v1346 = vsel %vm781, %v1306, %v1345
        %v1348 = vunpack.c.l.s4 1934713408
        %v1349 = vunpack.c.0.s8 %v1348
        %v1350 = vperm.slane %v1344, %v1349
        %v1352 = vunpack.c.l.s4 1934713408
        %v1353 = vunpack.c.0.s8 %v1352
        %v1354 = vperm.slane %v1346, %v1353
        %v1355 = vrot.slane %v1326, 4
        %v1356 = vsel %vm781, %v1355, %v1314
        %v1357 = vrot.slane %v1314, 4
        %v1358 = vsel %vm781, %v1326, %v1357
        %v1360 = vunpack.c.l.s4 1934713408
        %v1361 = vunpack.c.0.s8 %v1360
        %v1362 = vperm.slane %v1356, %v1361
        %v1364 = vunpack.c.l.s4 1934713408
        %v1365 = vunpack.c.0.s8 %v1364
        %v1366 = vperm.slane %v1358, %v1365
        %v1367 = vrot.slane %v1330, 4
        %v1368 = vsel %vm781, %v1367, %v1318
        %v1369 = vrot.slane %v1318, 4
        %v1370 = vsel %vm781, %v1330, %v1369
        %v1372 = vunpack.c.l.s4 1934713408
        %v1373 = vunpack.c.0.s8 %v1372
        %v1374 = vperm.slane %v1368, %v1373
        %v1376 = vunpack.c.l.s4 1934713408
        %v1377 = vunpack.c.0.s8 %v1376
        %v1378 = vperm.slane %v1370, %v1377
        %v1379 = vrot.slane %v1362, 4
        %v1380 = vsel %vm781, %v1379, %v1338
        %v1381 = vrot.slane %v1338, 4
        %v1382 = vsel %vm781, %v1362, %v1381
        %v1383 = vrot.slane %v1366, 4
        %v1384 = vsel %vm781, %v1383, %v1342
        %v1385 = vrot.slane %v1342, 4
        %v1386 = vsel %vm781, %v1366, %v1385
        %v1387 = vrot.slane %v1374, 4
        %v1388 = vsel %vm781, %v1387, %v1350
        %v1389 = vrot.slane %v1350, 4
        %v1390 = vsel %vm781, %v1374, %v1389
        %v1391 = vrot.slane %v1378, 4
        %v1392 = vsel %vm781, %v1391, %v1354
        %v1393 = vrot.slane %v1354, 4
        %v1394 = vsel %vm781, %v1378, %v1393
        %v1395 = vsel %vm781, %v1111, %v1092
        %v1397 = vunpack.c.l.s4 1983009808
        %v1398 = vunpack.c.0.s8 %v1397
        %v1399 = vperm.slane %v1395, %v1398
        %v1400 = vrot.slane %v1112, 4
        %v1401 = vsel %vm781, %v1400, %v1110
        %v1403 = vunpack.c.l.s4 1983009808
        %v1404 = vunpack.c.0.s8 %v1403
        %v1405 = vperm.slane %v1401, %v1404
        %v1406 = vsel %vm781, %v1115, %v1104
        %v1408 = vunpack.c.l.s4 1983009808
        %v1409 = vunpack.c.0.s8 %v1408
        %v1410 = vperm.slane %v1406, %v1409
        %v1411 = vrot.slane %v1116, 4
        %v1412 = vsel %vm781, %v1411, %v1114
        %v1414 = vunpack.c.l.s4 1983009808
        %v1415 = vunpack.c.0.s8 %v1414
        %v1416 = vperm.slane %v1412, %v1415
        %v1417 = vrot.slane %v1405, 4
        %v1418 = vsel %vm781, %v1417, %v1399
        %v1419 = vrot.slane %v1399, 4
        %v1420 = vsel %vm781, %v1405, %v1419
        %v1422 = vunpack.c.l.s4 1934713408
        %v1423 = vunpack.c.0.s8 %v1422
        %v1424 = vperm.slane %v1418, %v1423
        %v1426 = vunpack.c.l.s4 1934713408
        %v1427 = vunpack.c.0.s8 %v1426
        %v1428 = vperm.slane %v1420, %v1427
        %v1429 = vrot.slane %v1416, 4
        %v1430 = vsel %vm781, %v1429, %v1410
        %v1431 = vrot.slane %v1410, 4
        %v1432 = vsel %vm781, %v1416, %v1431
        %v1434 = vunpack.c.l.s4 1934713408
        %v1435 = vunpack.c.0.s8 %v1434
        %v1436 = vperm.slane %v1430, %v1435
        %v1438 = vunpack.c.l.s4 1934713408
        %v1439 = vunpack.c.0.s8 %v1438
        %v1440 = vperm.slane %v1432, %v1439
        %v1441 = vrot.slane %v1436, 4
        %v1442 = vsel %vm781, %v1441, %v1424
        %v1443 = vrot.slane %v1424, 4
        %v1444 = vsel %vm781, %v1436, %v1443
        %v1445 = vrot.slane %v1440, 4
        %v1446 = vsel %vm781, %v1445, %v1428
        %v1447 = vrot.slane %v1428, 4
        %v1448 = vsel %vm781, %v1440, %v1447
        %v1449 = vpack.c.bf16 %v1214, %v1214
        %v1450 = vpack.c.bf16 %v1216, %v1216
        %v1451 = vpack.c.bf16 %v1218, %v1218
        %v1452 = vpack.c.bf16 %v1220, %v1220
        %v1453 = vpack.c.bf16 %v1380, %v1380
        %v1454 = vpack.c.bf16 %v1382, %v1382
        %v1455 = vpack.c.bf16 %v1384, %v1384
        %v1456 = vpack.c.bf16 %v1386, %v1386
        %v1457 = vpack.c.bf16 %v1222, %v1222
        %v1458 = vpack.c.bf16 %v1224, %v1224
        %v1459 = vpack.c.bf16 %v1226, %v1226
        %v1460 = vpack.c.bf16 %v1228, %v1228
        %v1461 = vpack.c.bf16 %v1388, %v1388
        %v1462 = vpack.c.bf16 %v1390, %v1390
        %v1463 = vpack.c.bf16 %v1392, %v1392
        %v1464 = vpack.c.bf16 %v1394, %v1394
        %v1465 = vpack.c.bf16 %v1276, %v1276
        %v1466 = vpack.c.bf16 %v1278, %v1278
        %v1467 = vpack.c.bf16 %v1280, %v1280
        %v1468 = vpack.c.bf16 %v1282, %v1282
        %v1469 = vpack.c.bf16 %v1442, %v1442
        %v1470 = vpack.c.bf16 %v1444, %v1444
        %v1471 = vpack.c.bf16 %v1446, %v1446
        %v1472 = vpack.c.bf16 %v1448, %v1448
        %vm1473 = vcmask 64512
        %v1475 = vsel %vm1473, %v1449, 0
        %v1478 = vsel %vm1473, %v1457, 0
        %1480 = vmatpush.bf16.xpose.msra.mxu0 0
        %1481 = vmatpush.bf16.xpose.msra.mxu0 0
        %1482 = vmatpush.bf16.xpose.msra.mxu0 0
        %1483 = vmatpush.bf16.xpose.msra.mxu0 0
        %1484 = vmatpush.bf16.xpose.msra.mxu0 0
        %1485 = vmatpush.bf16.xpose.msra.mxu0 0
        %1486 = vmatpush.bf16.xpose.msra.mxu0 0
        %1487 = vmatpush.bf16.xpose.msra.mxu0 %v1478
        %1488 = vmatmul.bf16.gmra.mxu0 %v1475
        %v1489 = vpop.f32.mrf.mxu0
        %v1490 = vadd.f32 0.0, %v1489
        %v1491 = vpop.f32.mrf.mxu0
        %1492 = vdwg.mxu0
        %v1494 = vsel %vm1473, %v1450, 0
        %v1497 = vsel %vm1473, %v1458, 0
        %1499 = vmatpush.bf16.xpose.msra.mxu0 0
        %1500 = vmatpush.bf16.xpose.msra.mxu0 0
        %1501 = vmatpush.bf16.xpose.msra.mxu0 0
        %1502 = vmatpush.bf16.xpose.msra.mxu0 0
        %1503 = vmatpush.bf16.xpose.msra.mxu0 0
        %1504 = vmatpush.bf16.xpose.msra.mxu0 0
        %1505 = vmatpush.bf16.xpose.msra.mxu0 0
        %1506 = vmatpush.bf16.xpose.msra.mxu0 %v1497
        %1507 = vmatmul.bf16.gmra.mxu0 %v1494
        %v1508 = vpop.f32.mrf.mxu0
        %v1509 = vadd.f32 0.0, %v1508
        %v1510 = vpop.f32.mrf.mxu0
        %1511 = vdwg.mxu0
        %v1513 = vsel %vm1473, %v1451, 0
        %v1516 = vsel %vm1473, %v1459, 0
        %1518 = vmatpush.bf16.xpose.msra.mxu0 0
        %1519 = vmatpush.bf16.xpose.msra.mxu0 0
        %1520 = vmatpush.bf16.xpose.msra.mxu0 0
        %1521 = vmatpush.bf16.xpose.msra.mxu0 0
        %1522 = vmatpush.bf16.xpose.msra.mxu0 0
        %1523 = vmatpush.bf16.xpose.msra.mxu0 0
        %1524 = vmatpush.bf16.xpose.msra.mxu0 0
        %1525 = vmatpush.bf16.xpose.msra.mxu0 %v1516
        %1526 = vmatmul.bf16.gmra.mxu0 %v1513
        %v1527 = vpop.f32.mrf.mxu0
        %v1528 = vadd.f32 0.0, %v1527
        %v1529 = vpop.f32.mrf.mxu0
        %1530 = vdwg.mxu0
        %v1532 = vsel %vm1473, %v1452, 0
        %v1535 = vsel %vm1473, %v1460, 0
        %1537 = vmatpush.bf16.xpose.msra.mxu0 0
        %1538 = vmatpush.bf16.xpose.msra.mxu0 0
        %1539 = vmatpush.bf16.xpose.msra.mxu0 0
        %1540 = vmatpush.bf16.xpose.msra.mxu0 0
        %1541 = vmatpush.bf16.xpose.msra.mxu0 0
        %1542 = vmatpush.bf16.xpose.msra.mxu0 0
        %1543 = vmatpush.bf16.xpose.msra.mxu0 0
        %1544 = vmatpush.bf16.xpose.msra.mxu0 %v1535
        %1545 = vmatmul.bf16.gmra.mxu0 %v1532
        %v1546 = vpop.f32.mrf.mxu0
        %v1547 = vadd.f32 0.0, %v1546
        %v1548 = vpop.f32.mrf.mxu0
        %1549 = vdwg.mxu0
        %v1551 = vsel %vm1473, %v1453, 0
        %v1554 = vsel %vm1473, %v1461, 0
        %1556 = vmatpush.bf16.xpose.msra.mxu0 0
        %1557 = vmatpush.bf16.xpose.msra.mxu0 0
        %1558 = vmatpush.bf16.xpose.msra.mxu0 0
        %1559 = vmatpush.bf16.xpose.msra.mxu0 0
        %1560 = vmatpush.bf16.xpose.msra.mxu0 0
        %1561 = vmatpush.bf16.xpose.msra.mxu0 0
        %1562 = vmatpush.bf16.xpose.msra.mxu0 0
        %1563 = vmatpush.bf16.xpose.msra.mxu0 %v1554
        %1564 = vmatmul.bf16.gmra.mxu0 %v1551
        %v1565 = vpop.f32.mrf.mxu0
        %v1566 = vadd.f32 0.0, %v1565
        %v1567 = vpop.f32.mrf.mxu0
        %1568 = vdwg.mxu0
        %v1570 = vsel %vm1473, %v1454, 0
        %v1573 = vsel %vm1473, %v1462, 0
        %1575 = vmatpush.bf16.xpose.msra.mxu0 0
        %1576 = vmatpush.bf16.xpose.msra.mxu0 0
        %1577 = vmatpush.bf16.xpose.msra.mxu0 0
        %1578 = vmatpush.bf16.xpose.msra.mxu0 0
        %1579 = vmatpush.bf16.xpose.msra.mxu0 0
        %1580 = vmatpush.bf16.xpose.msra.mxu0 0
        %1581 = vmatpush.bf16.xpose.msra.mxu0 0
        %1582 = vmatpush.bf16.xpose.msra.mxu0 %v1573
        %1583 = vmatmul.bf16.gmra.mxu0 %v1570
        %v1584 = vpop.f32.mrf.mxu0
        %v1585 = vadd.f32 0.0, %v1584
        %v1586 = vpop.f32.mrf.mxu0
        %1587 = vdwg.mxu0
        %v1589 = vsel %vm1473, %v1455, 0
        %v1592 = vsel %vm1473, %v1463, 0
        %1594 = vmatpush.bf16.xpose.msra.mxu0 0
        %1595 = vmatpush.bf16.xpose.msra.mxu0 0
        %1596 = vmatpush.bf16.xpose.msra.mxu0 0
        %1597 = vmatpush.bf16.xpose.msra.mxu0 0
        %1598 = vmatpush.bf16.xpose.msra.mxu0 0
        %1599 = vmatpush.bf16.xpose.msra.mxu0 0
        %1600 = vmatpush.bf16.xpose.msra.mxu0 0
        %1601 = vmatpush.bf16.xpose.msra.mxu0 %v1592
        %1602 = vmatmul.bf16.gmra.mxu0 %v1589
        %v1603 = vpop.f32.mrf.mxu0
        %v1604 = vadd.f32 0.0, %v1603
        %v1605 = vpop.f32.mrf.mxu0
        %1606 = vdwg.mxu0
        %v1608 = vsel %vm1473, %v1456, 0
        %v1611 = vsel %vm1473, %v1464, 0
        %1613 = vmatpush.bf16.xpose.msra.mxu0 0
        %1614 = vmatpush.bf16.xpose.msra.mxu0 0
        %1615 = vmatpush.bf16.xpose.msra.mxu0 0
        %1616 = vmatpush.bf16.xpose.msra.mxu0 0
        %1617 = vmatpush.bf16.xpose.msra.mxu0 0
        %1618 = vmatpush.bf16.xpose.msra.mxu0 0
        %1619 = vmatpush.bf16.xpose.msra.mxu0 0
        %1620 = vmatpush.bf16.xpose.msra.mxu0 %v1611
        %1621 = vmatmul.bf16.gmra.mxu0 %v1608
        %v1622 = vpop.f32.mrf.mxu0
        %v1623 = vadd.f32 0.0, %v1622
        %v1624 = vpop.f32.mrf.mxu0
        %1625 = vdwg.mxu0
        %v1626 = vld [vmem:[#allocation2] sm:$0xff]
        %v1627 = vld [vmem:[#allocation2 + $0x8] sm:$0xff]
        %v1628 = vadd.f32 %v1490, %v1626
        %v1629 = vadd.f32 %v1509, %v1626
        %v1630 = vadd.f32 %v1528, %v1626
        %v1631 = vadd.f32 %v1547, %v1626
        %v1632 = vadd.f32 %v1566, %v1627
        %v1633 = vadd.f32 %v1585, %v1627
        %v1634 = vadd.f32 %v1604, %v1627
        %v1635 = vadd.f32 %v1623, %v1627
        %v1636 = vsel %vm1473, %v1628, -inf
        %1637 = vmax.xlane.f32.xlu0 %v1636
        %v1638 = vpop.xlane.xlu0 %1637
        %v1639 = vsel %vm1473, %v1629, -inf
        %1640 = vmax.xlane.f32.xlu0 %v1639
        %v1641 = vpop.xlane.xlu0 %1640
        %v1642 = vsel %vm1473, %v1630, -inf
        %1643 = vmax.xlane.f32.xlu0 %v1642
        %v1644 = vpop.xlane.xlu0 %1643
        %v1645 = vsel %vm1473, %v1631, -inf
        %1646 = vmax.xlane.f32.xlu0 %v1645
        %v1647 = vpop.xlane.xlu0 %1646
        %v1648 = vsel %vm1473, %v1632, -inf
        %1649 = vmax.xlane.f32.xlu0 %v1648
        %v1650 = vpop.xlane.xlu0 %1649
        %v1651 = vsel %vm1473, %v1633, -inf
        %1652 = vmax.xlane.f32.xlu0 %v1651
        %v1653 = vpop.xlane.xlu0 %1652
        %v1654 = vsel %vm1473, %v1634, -inf
        %1655 = vmax.xlane.f32.xlu0 %v1654
        %v1656 = vpop.xlane.xlu0 %1655
        %v1657 = vsel %vm1473, %v1635, -inf
        %1658 = vmax.xlane.f32.xlu0 %v1657
        %v1659 = vpop.xlane.xlu0 %1658
        %v1660 = vsub.f32 %v1628, %v1638
        %v1661 = vsub.f32 %v1629, %v1641
        %v1662 = vsub.f32 %v1630, %v1644
        %v1663 = vsub.f32 %v1631, %v1647
        %v1664 = vsub.f32 %v1632, %v1650
        %v1665 = vsub.f32 %v1633, %v1653
        %v1666 = vsub.f32 %v1634, %v1656
        %v1667 = vsub.f32 %v1635, %v1659
        %v1668 = vmul.f32 %v1660, 1.442695
        %v1669 = vpow.pop %v1668
        %v1670 = vmul.f32 %v1661, 1.442695
        %v1671 = vpow.pop %v1670
        %v1672 = vmul.f32 %v1662, 1.442695
        %v1673 = vpow.pop %v1672
        %v1674 = vmul.f32 %v1663, 1.442695
        %v1675 = vpow.pop %v1674
        %v1676 = vmul.f32 %v1664, 1.442695
        %v1677 = vpow.pop %v1676
        %v1678 = vmul.f32 %v1665, 1.442695
        %v1679 = vpow.pop %v1678
        %v1680 = vmul.f32 %v1666, 1.442695
        %v1681 = vpow.pop %v1680
        %v1682 = vmul.f32 %v1667, 1.442695
        %v1683 = vpow.pop %v1682
        %v1684 = vsel %vm1473, %v1669, 0.0
        %1685 = vadd.xlane.f32.xlu0 %v1684
        %v1686 = vpop.xlane.xlu0 %1685
        %v1687 = vsel %vm1473, %v1671, 0.0
        %1688 = vadd.xlane.f32.xlu0 %v1687
        %v1689 = vpop.xlane.xlu0 %1688
        %v1690 = vsel %vm1473, %v1673, 0.0
        %1691 = vadd.xlane.f32.xlu0 %v1690
        %v1692 = vpop.xlane.xlu0 %1691
        %v1693 = vsel %vm1473, %v1675, 0.0
        %1694 = vadd.xlane.f32.xlu0 %v1693
        %v1695 = vpop.xlane.xlu0 %1694
        %v1696 = vsel %vm1473, %v1677, 0.0
        %1697 = vadd.xlane.f32.xlu0 %v1696
        %v1698 = vpop.xlane.xlu0 %1697
        %v1699 = vsel %vm1473, %v1679, 0.0
        %1700 = vadd.xlane.f32.xlu0 %v1699
        %v1701 = vpop.xlane.xlu0 %1700
        %v1702 = vsel %vm1473, %v1681, 0.0
        %1703 = vadd.xlane.f32.xlu0 %v1702
        %v1704 = vpop.xlane.xlu0 %1703
        %v1705 = vsel %vm1473, %v1683, 0.0
        %1706 = vadd.xlane.f32.xlu0 %v1705
        %v1707 = vpop.xlane.xlu0 %1706
        %v1708 = vrcp.pop %v1686
        %v1709 = vrcp.pop %v1689
        %v1710 = vrcp.pop %v1692
        %v1711 = vrcp.pop %v1695
        %v1712 = vrcp.pop %v1698
        %v1713 = vrcp.pop %v1701
        %v1714 = vrcp.pop %v1704
        %v1715 = vrcp.pop %v1707
        %v1716 = vmul.f32 %v1669, %v1708
        %v1717 = vmul.f32 %v1671, %v1709
        %v1718 = vmul.f32 %v1673, %v1710
        %v1719 = vmul.f32 %v1675, %v1711
        %v1720 = vmul.f32 %v1677, %v1712
        %v1721 = vmul.f32 %v1679, %v1713
        %v1722 = vmul.f32 %v1681, %v1714
        %v1723 = vmul.f32 %v1683, %v1715
        %v1724 = vld [vmem:[#allocation3] sm:$0xff]
        %v1725 = vld [vmem:[#allocation3 + $0x8] sm:$0xff]
        %v1726 = vsub.f32 1.0, %v1724
        %v1727 = vsub.f32 1.0, %v1725
        %1729 = vset.pattern.permute.xlu0 0
        %1730 = vperm.xlu0 %1729, %v1726
        %v1731 = vpop.permute.xlu0 %1730
        %1734 = vset.pattern.permute.xlu0 0
        %1735 = vperm.xlu0 %1734, %v1727
        %v1736 = vpop.permute.xlu0 %1735
        %v1738 = vmul.f32 %v1716, %v1731
        %v1739 = vmul.f32 %v1717, %v1731
        %v1740 = vmul.f32 %v1718, %v1731
        %v1741 = vmul.f32 %v1719, %v1731
        %v1742 = vmul.f32 %v1720, %v1736
        %v1743 = vmul.f32 %v1721, %v1736
        %v1744 = vmul.f32 %v1722, %v1736
        %v1745 = vmul.f32 %v1723, %v1736
        %v1746 = vpack.c.bf16 %v1738, %v1738
        %v1747 = vpack.c.bf16 %v1739, %v1739
        %v1748 = vpack.c.bf16 %v1740, %v1740
        %v1749 = vpack.c.bf16 %v1741, %v1741
        %v1750 = vpack.c.bf16 %v1742, %v1742
        %v1751 = vpack.c.bf16 %v1743, %v1743
        %v1752 = vpack.c.bf16 %v1744, %v1744
        %v1753 = vpack.c.bf16 %v1745, %v1745
        %v1755 = vsel %vm1473, %v1746, 0
        %vm1757 = vcmask 1043456
        %v1759 = vsel %vm1757, %v1465, 0
        %1761 = vmatpush.bf16.msra.mxu0 0
        %1762 = vmatpush.bf16.msra.mxu0 0
        %1763 = vmatpush.bf16.msra.mxu0 0
        %1764 = vmatpush.bf16.msra.mxu0 0
        %1765 = vmatpush.bf16.msra.mxu0 0
        %1766 = vmatpush.bf16.msra.mxu0 0
        %1767 = vmatpush.bf16.msra.mxu0 0
        %1768 = vmatpush.bf16.msra.mxu0 %v1759
        %1769 = vmatmul.bf16.gmra.mxu0 %v1755
        %v1770 = vpop.f32.mrf.mxu0
        %v1771 = vadd.f32 0.0, %v1770
        %v1772 = vpop.f32.mrf.mxu0
        %1773 = vdwg.mxu0
        %v1775 = vsel %vm1473, %v1747, 0
        %v1778 = vsel %vm1757, %v1466, 0
        %1780 = vmatpush.bf16.msra.mxu0 0
        %1781 = vmatpush.bf16.msra.mxu0 0
        %1782 = vmatpush.bf16.msra.mxu0 0
        %1783 = vmatpush.bf16.msra.mxu0 0
        %1784 = vmatpush.bf16.msra.mxu0 0
        %1785 = vmatpush.bf16.msra.mxu0 0
        %1786 = vmatpush.bf16.msra.mxu0 0
        %1787 = vmatpush.bf16.msra.mxu0 %v1778
        %1788 = vmatmul.bf16.gmra.mxu0 %v1775
        %v1789 = vpop.f32.mrf.mxu0
        %v1790 = vadd.f32 0.0, %v1789
        %v1791 = vpop.f32.mrf.mxu0
        %1792 = vdwg.mxu0
        %v1794 = vsel %vm1473, %v1748, 0
        %v1797 = vsel %vm1757, %v1467, 0
        %1799 = vmatpush.bf16.msra.mxu0 0
        %1800 = vmatpush.bf16.msra.mxu0 0
        %1801 = vmatpush.bf16.msra.mxu0 0
        %1802 = vmatpush.bf16.msra.mxu0 0
        %1803 = vmatpush.bf16.msra.mxu0 0
        %1804 = vmatpush.bf16.msra.mxu0 0
        %1805 = vmatpush.bf16.msra.mxu0 0
        %1806 = vmatpush.bf16.msra.mxu0 %v1797
        %1807 = vmatmul.bf16.gmra.mxu0 %v1794
        %v1808 = vpop.f32.mrf.mxu0
        %v1809 = vadd.f32 0.0, %v1808
        %v1810 = vpop.f32.mrf.mxu0
        %1811 = vdwg.mxu0
        %v1813 = vsel %vm1473, %v1749, 0
        %v1816 = vsel %vm1757, %v1468, 0
        %1818 = vmatpush.bf16.msra.mxu0 0
        %1819 = vmatpush.bf16.msra.mxu0 0
        %1820 = vmatpush.bf16.msra.mxu0 0
        %1821 = vmatpush.bf16.msra.mxu0 0
        %1822 = vmatpush.bf16.msra.mxu0 0
        %1823 = vmatpush.bf16.msra.mxu0 0
        %1824 = vmatpush.bf16.msra.mxu0 0
        %1825 = vmatpush.bf16.msra.mxu0 %v1816
        %1826 = vmatmul.bf16.gmra.mxu0 %v1813
        %v1827 = vpop.f32.mrf.mxu0
        %v1828 = vadd.f32 0.0, %v1827
        %v1829 = vpop.f32.mrf.mxu0
        %1830 = vdwg.mxu0
        %v1832 = vsel %vm1473, %v1750, 0
        %v1835 = vsel %vm1757, %v1469, 0
        %1837 = vmatpush.bf16.msra.mxu0 0
        %1838 = vmatpush.bf16.msra.mxu0 0
        %1839 = vmatpush.bf16.msra.mxu0 0
        %1840 = vmatpush.bf16.msra.mxu0 0
        %1841 = vmatpush.bf16.msra.mxu0 0
        %1842 = vmatpush.bf16.msra.mxu0 0
        %1843 = vmatpush.bf16.msra.mxu0 0
        %1844 = vmatpush.bf16.msra.mxu0 %v1835
        %1845 = vmatmul.bf16.gmra.mxu0 %v1832
        %v1846 = vpop.f32.mrf.mxu0
        %v1847 = vadd.f32 0.0, %v1846
        %v1848 = vpop.f32.mrf.mxu0
        %1849 = vdwg.mxu0
        %v1851 = vsel %vm1473, %v1751, 0
        %v1854 = vsel %vm1757, %v1470, 0
        %1856 = vmatpush.bf16.msra.mxu0 0
        %1857 = vmatpush.bf16.msra.mxu0 0
        %1858 = vmatpush.bf16.msra.mxu0 0
        %1859 = vmatpush.bf16.msra.mxu0 0
        %1860 = vmatpush.bf16.msra.mxu0 0
        %1861 = vmatpush.bf16.msra.mxu0 0
        %1862 = vmatpush.bf16.msra.mxu0 0
        %1863 = vmatpush.bf16.msra.mxu0 %v1854
        %1864 = vmatmul.bf16.gmra.mxu0 %v1851
        %v1865 = vpop.f32.mrf.mxu0
        %v1866 = vadd.f32 0.0, %v1865
        %v1867 = vpop.f32.mrf.mxu0
        %1868 = vdwg.mxu0
        %v1870 = vsel %vm1473, %v1752, 0
        %v1873 = vsel %vm1757, %v1471, 0
        %1875 = vmatpush.bf16.msra.mxu0 0
        %1876 = vmatpush.bf16.msra.mxu0 0
        %1877 = vmatpush.bf16.msra.mxu0 0
        %1878 = vmatpush.bf16.msra.mxu0 0
        %1879 = vmatpush.bf16.msra.mxu0 0
        %1880 = vmatpush.bf16.msra.mxu0 0
        %1881 = vmatpush.bf16.msra.mxu0 0
        %1882 = vmatpush.bf16.msra.mxu0 %v1873
        %1883 = vmatmul.bf16.gmra.mxu0 %v1870
        %v1884 = vpop.f32.mrf.mxu0
        %v1885 = vadd.f32 0.0, %v1884
        %v1886 = vpop.f32.mrf.mxu0
        %1887 = vdwg.mxu0
        %v1889 = vsel %vm1473, %v1753, 0
        %v1892 = vsel %vm1757, %v1472, 0
        %1894 = vmatpush.bf16.msra.mxu0 0
        %1895 = vmatpush.bf16.msra.mxu0 0
        %1896 = vmatpush.bf16.msra.mxu0 0
        %1897 = vmatpush.bf16.msra.mxu0 0
        %1898 = vmatpush.bf16.msra.mxu0 0
        %1899 = vmatpush.bf16.msra.mxu0 0
        %1900 = vmatpush.bf16.msra.mxu0 0
        %1901 = vmatpush.bf16.msra.mxu0 %v1892
        %1902 = vmatmul.bf16.gmra.mxu0 %v1889
        %v1903 = vpop.f32.mrf.mxu0
        %v1904 = vadd.f32 0.0, %v1903
        %v1905 = vpop.f32.mrf.mxu0
        %1906 = vdwg.mxu0
        %v1907 = vrot.slane %v1809, 4
        %v1908 = vsel %vm781, %v1907, %v1771
        %v1909 = vrot.slane %v1771, 4
        %v1910 = vsel %vm781, %v1809, %v1909
        %v1912 = vunpack.c.l.s4 1983009808
        %v1913 = vunpack.c.0.s8 %v1912
        %v1914 = vperm.slane %v1908, %v1913
        %v1916 = vunpack.c.l.s4 1983009808
        %v1917 = vunpack.c.0.s8 %v1916
        %v1918 = vperm.slane %v1910, %v1917
        %v1919 = vrot.slane %v1828, 4
        %v1920 = vsel %vm781, %v1919, %v1790
        %v1921 = vrot.slane %v1790, 4
        %v1922 = vsel %vm781, %v1828, %v1921
        %v1924 = vunpack.c.l.s4 1983009808
        %v1925 = vunpack.c.0.s8 %v1924
        %v1926 = vperm.slane %v1920, %v1925
        %v1928 = vunpack.c.l.s4 1983009808
        %v1929 = vunpack.c.0.s8 %v1928
        %v1930 = vperm.slane %v1922, %v1929
        %v1931 = vrot.slane %v1926, 4
        %v1932 = vsel %vm781, %v1931, %v1914
        %v1933 = vrot.slane %v1914, 4
        %v1934 = vsel %vm781, %v1926, %v1933
        %v1936 = vunpack.c.l.s4 1934713408
        %v1937 = vunpack.c.0.s8 %v1936
        %v1938 = vperm.slane %v1932, %v1937
        %v1940 = vunpack.c.l.s4 1934713408
        %v1941 = vunpack.c.0.s8 %v1940
        %v1942 = vperm.slane %v1934, %v1941
        %v1943 = vrot.slane %v1930, 4
        %v1944 = vsel %vm781, %v1943, %v1918
        %v1945 = vrot.slane %v1918, 4
        %v1946 = vsel %vm781, %v1930, %v1945
        %v1948 = vunpack.c.l.s4 1934713408
        %v1949 = vunpack.c.0.s8 %v1948
        %v1950 = vperm.slane %v1944, %v1949
        %v1952 = vunpack.c.l.s4 1934713408
        %v1953 = vunpack.c.0.s8 %v1952
        %v1954 = vperm.slane %v1946, %v1953
        %v1955 = vrot.slane %v1938, 4
        %v1956 = vsel %vm781, 0.0, %v1955
        %v1957 = vrot.slane %v1942, 4
        %v1958 = vsel %vm781, 0.0, %v1957
        %v1959 = vrot.slane %v1950, 4
        %v1960 = vsel %vm781, 0.0, %v1959
        %v1961 = vrot.slane %v1954, 4
        %v1962 = vsel %vm781, 0.0, %v1961
        %v1963 = vrot.slane %v1885, 4
        %v1964 = vsel %vm781, %v1963, %v1847
        %v1965 = vrot.slane %v1847, 4
        %v1966 = vsel %vm781, %v1885, %v1965
        %v1968 = vunpack.c.l.s4 1983009808
        %v1969 = vunpack.c.0.s8 %v1968
        %v1970 = vperm.slane %v1964, %v1969
        %v1972 = vunpack.c.l.s4 1983009808
        %v1973 = vunpack.c.0.s8 %v1972
        %v1974 = vperm.slane %v1966, %v1973
        %v1975 = vrot.slane %v1904, 4
        %v1976 = vsel %vm781, %v1975, %v1866
        %v1977 = vrot.slane %v1866, 4
        %v1978 = vsel %vm781, %v1904, %v1977
        %v1980 = vunpack.c.l.s4 1983009808
        %v1981 = vunpack.c.0.s8 %v1980
        %v1982 = vperm.slane %v1976, %v1981
        %v1984 = vunpack.c.l.s4 1983009808
        %v1985 = vunpack.c.0.s8 %v1984
        %v1986 = vperm.slane %v1978, %v1985
        %v1987 = vrot.slane %v1982, 4
        %v1988 = vsel %vm781, %v1987, %v1970
        %v1989 = vrot.slane %v1970, 4
        %v1990 = vsel %vm781, %v1982, %v1989
        %v1992 = vunpack.c.l.s4 1934713408
        %v1993 = vunpack.c.0.s8 %v1992
        %v1994 = vperm.slane %v1988, %v1993
        %v1996 = vunpack.c.l.s4 1934713408
        %v1997 = vunpack.c.0.s8 %v1996
        %v1998 = vperm.slane %v1990, %v1997
        %v1999 = vrot.slane %v1986, 4
        %v2000 = vsel %vm781, %v1999, %v1974
        %v2001 = vrot.slane %v1974, 4
        %v2002 = vsel %vm781, %v1986, %v2001
        %v2004 = vunpack.c.l.s4 1934713408
        %v2005 = vunpack.c.0.s8 %v2004
        %v2006 = vperm.slane %v2000, %v2005
        %v2008 = vunpack.c.l.s4 1934713408
        %v2009 = vunpack.c.0.s8 %v2008
        %v2010 = vperm.slane %v2002, %v2009
        %v2011 = vrot.slane %v1994, 4
        %v2012 = vsel %vm781, 0.0, %v2011
        %v2013 = vrot.slane %v1998, 4
        %v2014 = vsel %vm781, 0.0, %v2013
        %v2015 = vrot.slane %v2006, 4
        %v2016 = vsel %vm781, 0.0, %v2015
        %v2017 = vrot.slane %v2010, 4
        %v2018 = vsel %vm781, 0.0, %v2017
        %v2019 = vsel %vm781, %v1957, %v1938
        %v2021 = vunpack.c.l.s4 1983009808
        %v2022 = vunpack.c.0.s8 %v2021
        %v2023 = vperm.slane %v2019, %v2022
        %v2024 = vrot.slane %v1958, 4
        %v2025 = vsel %vm781, %v2024, %v1956
        %v2027 = vunpack.c.l.s4 1983009808
        %v2028 = vunpack.c.0.s8 %v2027
        %v2029 = vperm.slane %v2025, %v2028
        %v2030 = vsel %vm781, %v1961, %v1950
        %v2032 = vunpack.c.l.s4 1983009808
        %v2033 = vunpack.c.0.s8 %v2032
        %v2034 = vperm.slane %v2030, %v2033
        %v2035 = vrot.slane %v1962, 4
        %v2036 = vsel %vm781, %v2035, %v1960
        %v2038 = vunpack.c.l.s4 1983009808
        %v2039 = vunpack.c.0.s8 %v2038
        %v2040 = vperm.slane %v2036, %v2039
        %v2041 = vrot.slane %v2029, 4
        %v2042 = vsel %vm781, %v2041, %v2023
        %v2043 = vrot.slane %v2023, 4
        %v2044 = vsel %vm781, %v2029, %v2043
        %v2046 = vunpack.c.l.s4 1934713408
        %v2047 = vunpack.c.0.s8 %v2046
        %v2048 = vperm.slane %v2042, %v2047
        %v2050 = vunpack.c.l.s4 1934713408
        %v2051 = vunpack.c.0.s8 %v2050
        %v2052 = vperm.slane %v2044, %v2051
        %v2053 = vrot.slane %v2040, 4
        %v2054 = vsel %vm781, %v2053, %v2034
        %v2055 = vrot.slane %v2034, 4
        %v2056 = vsel %vm781, %v2040, %v2055
        %v2058 = vunpack.c.l.s4 1934713408
        %v2059 = vunpack.c.0.s8 %v2058
        %v2060 = vperm.slane %v2054, %v2059
        %v2062 = vunpack.c.l.s4 1934713408
        %v2063 = vunpack.c.0.s8 %v2062
        %v2064 = vperm.slane %v2056, %v2063
        %v2065 = vrot.slane %v2060, 4
        %v2066 = vsel %vm781, %v2065, %v2048
        %v2067 = vrot.slane %v2048, 4
        %v2068 = vsel %vm781, %v2060, %v2067
        %v2069 = vrot.slane %v2064, 4
        %v2070 = vsel %vm781, %v2069, %v2052
        %v2071 = vrot.slane %v2052, 4
        %v2072 = vsel %vm781, %v2064, %v2071
        %v2073 = vsel %vm781, %v2013, %v1994
        %v2075 = vunpack.c.l.s4 1983009808
        %v2076 = vunpack.c.0.s8 %v2075
        %v2077 = vperm.slane %v2073, %v2076
        %v2078 = vrot.slane %v2014, 4
        %v2079 = vsel %vm781, %v2078, %v2012
        %v2081 = vunpack.c.l.s4 1983009808
        %v2082 = vunpack.c.0.s8 %v2081
        %v2083 = vperm.slane %v2079, %v2082
        %v2084 = vsel %vm781, %v2017, %v2006
        %v2086 = vunpack.c.l.s4 1983009808
        %v2087 = vunpack.c.0.s8 %v2086
        %v2088 = vperm.slane %v2084, %v2087
        %v2089 = vrot.slane %v2018, 4
        %v2090 = vsel %vm781, %v2089, %v2016
        %v2092 = vunpack.c.l.s4 1983009808
        %v2093 = vunpack.c.0.s8 %v2092
        %v2094 = vperm.slane %v2090, %v2093
        %v2095 = vrot.slane %v2083, 4
        %v2096 = vsel %vm781, %v2095, %v2077
        %v2097 = vrot.slane %v2077, 4
        %v2098 = vsel %vm781, %v2083, %v2097
        %v2100 = vunpack.c.l.s4 1934713408
        %v2101 = vunpack.c.0.s8 %v2100
        %v2102 = vperm.slane %v2096, %v2101
        %v2104 = vunpack.c.l.s4 1934713408
        %v2105 = vunpack.c.0.s8 %v2104
        %v2106 = vperm.slane %v2098, %v2105
        %v2107 = vrot.slane %v2094, 4
        %v2108 = vsel %vm781, %v2107, %v2088
        %v2109 = vrot.slane %v2088, 4
        %v2110 = vsel %vm781, %v2094, %v2109
        %v2112 = vunpack.c.l.s4 1934713408
        %v2113 = vunpack.c.0.s8 %v2112
        %v2114 = vperm.slane %v2108, %v2113
        %v2116 = vunpack.c.l.s4 1934713408
        %v2117 = vunpack.c.0.s8 %v2116
        %v2118 = vperm.slane %v2110, %v2117
        %v2119 = vrot.slane %v2114, 4
        %v2120 = vsel %vm781, %v2119, %v2102
        %v2121 = vrot.slane %v2102, 4
        %v2122 = vsel %vm781, %v2114, %v2121
        %v2123 = vrot.slane %v2118, 4
        %v2124 = vsel %vm781, %v2123, %v2106
        %v2125 = vrot.slane %v2106, 4
        %v2126 = vsel %vm781, %v2118, %v2125
        %2129 = vrot.lane.b32.xlu0 %v2068, 8
        %v2130 = vpop.permute.xlu0 %2129
        %2131 = vrot.lane.b32.xlu0 %v2122, 8
        %v2132 = vpop.permute.xlu0 %2131
        %2137 = vrot.lane.b32.xlu0 %v2070, 16
        %v2138 = vpop.permute.xlu0 %2137
        %2139 = vrot.lane.b32.xlu0 %v2124, 16
        %v2140 = vpop.permute.xlu0 %2139
        %2145 = vrot.lane.b32.xlu0 %v2072, 24
        %v2146 = vpop.permute.xlu0 %2145
        %2147 = vrot.lane.b32.xlu0 %v2126, 24
        %v2148 = vpop.permute.xlu0 %2147
        %v2151 = vsel %vm1473, %v2066, %v2130
        %v2152 = vsel %vm1473, %v2120, %v2132
        %vm2153 = vcmask 130048
        %v2154 = vsel %vm2153, %v2151, %v2138
        %v2155 = vsel %vm2153, %v2152, %v2140
        %vm2156 = vcmask 195584
        %v2157 = vsel %vm2156, %v2154, %v2146
        %v2158 = vsel %vm2156, %v2155, %v2148
        %v2159 = vpack.c.bf16 %v2158, %v2157
        %v2160 = vld [vmem:[%s594] sm:$0xf]
        %v2161 = vld [vmem:[%s594 + $0x4] sm:$0xf]
        %v2162 = vld [vmem:[%s594 + $0x8] sm:$0xf]
        %v2163 = vld [vmem:[%s594 + $0xc] sm:$0xf]
        %v2164 = vld [vmem:[%s597] sm:$0x1]
        %v2166 = vperm.slane %v2164, 0
        %v2172 = vunpack.c.l.b16 %v2160
        %v2173 = vunpack.c.l.b16 %v2161
        %v2174 = vunpack.c.l.b16 %v2162
        %v2175 = vunpack.c.l.b16 %v2163
        %v2176 = vpack.c.b16 %v2173, %v2172
        %v2177 = vpack.c.b16 %v2175, %v2174
        %v2181 = vsel %vm694, %v2159, 0
        %2183 = vmatpush.bf16.msra.mxu0 0
        %2184 = vmatpush.bf16.msra.mxu0 0
        %2185 = vmatpush.bf16.msra.mxu0 0
        %2186 = vmatpush.bf16.msra.mxu0 0
        %2187 = vmatpush.bf16.msra.mxu0 0
        %2188 = vmatpush.bf16.msra.mxu0 0
        %2189 = vmatpush.bf16.msra.mxu0 %v2177
        %2190 = vmatpush.bf16.msra.mxu0 %v2176
        %2191 = vmatmul.bf16.gmra.mxu0 %v2181
        %v2192 = vpop.f32.mrf.mxu0
        %v2193 = vadd.f32 %v2166, %v2192
        %v2194 = vpop.f32.mrf.mxu0
        %v2195 = vadd.f32 %v2166, %v2194
        %2196 = vdwg.mxu0
        %v2197 = vadd.f32 %v671, %v2193
        %v2198 = vadd.f32 %v672, %v2195
        %v2199 = vld [vmem:[%s600] sm:$0x1]
        %v2200 = vld [vmem:[%s603] sm:$0x1]
        %v2201 = vsel %vm694, %v2197, 0.0
        %2202 = vadd.xlane.f32.xlu0 %v2201
        %v2203 = vpop.xlane.xlu0 %2202
        %v2204 = vsel %vm694, %v2198, 0.0
        %2205 = vadd.xlane.f32.xlu0 %v2204
        %v2206 = vpop.xlane.xlu0 %2205
        %v2207 = vrcp.pop 32.0
        %v2208 = vmul.f32 32.0, %v2207
        %v2209 = vsub.f32 1.0, %v2208
        %v2210 = vmul.f32 %v2207, %v2209
        %v2211 = vadd.f32 %v2207, %v2210
        %vm2212 = vweird.f32 %v2207
        %v2213 = vsel %vm2212, %v2207, %v2211
        %v2214 = vmul.f32 %v2203, %v2213
        %v2215 = vmul.f32 %v2206, %v2213
        %v2216 = vsub.f32 %v2197, %v2214
        %v2217 = vsub.f32 %v2198, %v2215
        %v2218 = vmul.f32 %v2216, %v2216
        %v2219 = vmul.f32 %v2217, %v2217
        %v2220 = vsel %vm694, %v2218, 0.0
        %2221 = vadd.xlane.f32.xlu0 %v2220
        %v2222 = vpop.xlane.xlu0 %2221
        %v2223 = vsel %vm694, %v2219, 0.0
        %2224 = vadd.xlane.f32.xlu0 %v2223
        %v2225 = vpop.xlane.xlu0 %2224
        %v2226 = vmul.f32 %v2222, %v2213
        %v2227 = vmul.f32 %v2225, %v2213
        %v2228 = vadd.f32 %v2226, 1e-05
        %v2229 = vadd.f32 %v2227, 1e-05
        %v2230 = vrsqrt.pop %v2228
        %v2231 = vmul.f32 %v2230, %v2228
        %v2232 = vmul.f32 %v2231, %v2230
        %v2233 = vmul.f32 0.5, %v2232
        %v2234 = vsub.f32 1.5, %v2233
        %v2235 = vmul.f32 %v2230, %v2234
        %vm2236 = vweird.f32 %v2228
        %vm2237 = vweird.f32 %v2230
        %vm2238 = vmor %vm2236, %vm2237
        %v2239 = vsel %vm2238, %v2230, %v2235
        %v2240 = vrsqrt.pop %v2229
        %v2241 = vmul.f32 %v2240, %v2229
        %v2242 = vmul.f32 %v2241, %v2240
        %v2243 = vmul.f32 0.5, %v2242
        %v2244 = vsub.f32 1.5, %v2243
        %v2245 = vmul.f32 %v2240, %v2244
        %vm2246 = vweird.f32 %v2229
        %vm2247 = vweird.f32 %v2240
        %vm2248 = vmor %vm2246, %vm2247
        %v2249 = vsel %vm2248, %v2240, %v2245
        %v2250 = vmul.f32 %v2216, %v2239
        %v2251 = vmul.f32 %v2217, %v2249
        %v2253 = vperm.slane %v2199, 0
        %v2255 = vmul.f32 %v2250, %v2253
        %v2256 = vmul.f32 %v2251, %v2253
        %v2258 = vperm.slane %v2200, 0
        %v2260 = vadd.f32 %v2255, %v2258
        %v2261 = vadd.f32 %v2256, %v2258
        %v2262 = vpack.c.bf16 %v2261, %v2260
        %v2263 = vld [vmem:[%s608] sm:$0xf]
        %v2264 = vld [vmem:[%s608 + $0x4] sm:$0xf]
        %v2265 = vld [vmem:[%s608 + $0x8] sm:$0xf]
        %v2266 = vld [vmem:[%s608 + $0xc] sm:$0xf]
        %v2267 = vld [vmem:[%s611] sm:$0x1]
        %v2269 = vperm.slane %v2267, 0
        %v2275 = vunpack.c.l.b16 %v2263
        %v2276 = vunpack.c.l.b16 %v2264
        %v2277 = vunpack.c.l.b16 %v2265
        %v2278 = vunpack.c.l.b16 %v2266
        %v2279 = vpack.c.b16 %v2276, %v2275
        %v2280 = vpack.c.b16 %v2278, %v2277
        %v2284 = vsel %vm694, %v2262, 0
        %2286 = vmatpush.bf16.msra.mxu0 0
        %2287 = vmatpush.bf16.msra.mxu0 0
        %2288 = vmatpush.bf16.msra.mxu0 0
        %2289 = vmatpush.bf16.msra.mxu0 0
        %2290 = vmatpush.bf16.msra.mxu0 0
        %2291 = vmatpush.bf16.msra.mxu0 0
        %2292 = vmatpush.bf16.msra.mxu0 %v2280
        %2293 = vmatpush.bf16.msra.mxu0 %v2279
        %2294 = vmatmul.bf16.gmra.mxu0 %v2284
        %v2295 = vpop.f32.mrf.mxu0
        %v2296 = vadd.f32 %v2269, %v2295
        %v2297 = vpop.f32.mrf.mxu0
        %v2298 = vadd.f32 %v2269, %v2297
        %2299 = vdwg.mxu0
        %v2300 = vmul.f32 %v2296, 0.5
        %v2301 = vmul.f32 %v2298, 0.5
        %v2302 = vmul.f32 %v2296, %v2296
        %v2303 = vmul.f32 %v2298, %v2298
        %v2304 = vmul.f32 %v2296, %v2302
        %v2305 = vmul.f32 %v2298, %v2303
        %v2306 = vmul.f32 %v2304, 0.044715
        %v2307 = vmul.f32 %v2305, 0.044715
        %v2308 = vadd.f32 %v2296, %v2306
        %v2309 = vadd.f32 %v2298, %v2307
        %v2310 = vmul.f32 %v2308, 0.7978846
        %v2311 = vmul.f32 %v2309, 0.7978846
        %v2312 = vtanh.pop %v2310
        %v2313 = vtanh.pop %v2311
        %v2314 = vadd.f32 %v2312, 1.0
        %v2315 = vadd.f32 %v2313, 1.0
        %v2316 = vmul.f32 %v2300, %v2314
        %v2317 = vmul.f32 %v2301, %v2315
        %v2318 = vpack.c.bf16 %v2317, %v2316
        %v2319 = vld [vmem:[%s616] sm:$0xf]
        %v2320 = vld [vmem:[%s616 + $0x4] sm:$0xf]
        %v2321 = vld [vmem:[%s616 + $0x8] sm:$0xf]
        %v2322 = vld [vmem:[%s616 + $0xc] sm:$0xf]
        %v2323 = vld [vmem:[%s616 + $0x10] sm:$0xf]
        %v2324 = vld [vmem:[%s616 + $0x14] sm:$0xf]
        %v2325 = vld [vmem:[%s616 + $0x18] sm:$0xf]
        %v2326 = vld [vmem:[%s616 + $0x1c] sm:$0xf]
        %v2327 = vld [vmem:[%s616 + $0x20] sm:$0xf]
        %v2328 = vld [vmem:[%s616 + $0x24] sm:$0xf]
        %v2329 = vld [vmem:[%s616 + $0x28] sm:$0xf]
        %v2330 = vld [vmem:[%s616 + $0x2c] sm:$0xf]
        %v2331 = vld [vmem:[%s616 + $0x30] sm:$0xf]
        %v2332 = vld [vmem:[%s616 + $0x34] sm:$0xf]
        %v2333 = vld [vmem:[%s616 + $0x38] sm:$0xf]
        %v2334 = vld [vmem:[%s616 + $0x3c] sm:$0xf]
        %v2335 = vld [vmem:[%s619] sm:$0x1]
        %v2337 = vperm.slane %v2335, 0
        %v2355 = vunpack.c.l.b16 %v2319
        %v2356 = vunpack.c.l.b16 %v2320
        %v2357 = vunpack.c.l.b16 %v2321
        %v2358 = vunpack.c.l.b16 %v2322
        %v2359 = vunpack.c.l.b16 %v2323
        %v2360 = vunpack.c.l.b16 %v2324
        %v2361 = vunpack.c.l.b16 %v2325
        %v2362 = vunpack.c.l.b16 %v2326
        %v2363 = vunpack.c.l.b16 %v2327
        %v2364 = vunpack.c.l.b16 %v2328
        %v2365 = vunpack.c.l.b16 %v2329
        %v2366 = vunpack.c.l.b16 %v2330
        %v2367 = vunpack.c.l.b16 %v2331
        %v2368 = vunpack.c.l.b16 %v2332
        %v2369 = vunpack.c.l.b16 %v2333
        %v2370 = vunpack.c.l.b16 %v2334
        %v2371 = vpack.c.b16 %v2356, %v2355
        %v2372 = vpack.c.b16 %v2358, %v2357
        %v2373 = vpack.c.b16 %v2360, %v2359
        %v2374 = vpack.c.b16 %v2362, %v2361
        %v2375 = vpack.c.b16 %v2364, %v2363
        %v2376 = vpack.c.b16 %v2366, %v2365
        %v2377 = vpack.c.b16 %v2368, %v2367
        %v2378 = vpack.c.b16 %v2370, %v2369
        %2387 = vmatpush.bf16.msra.mxu0 %v2378
        %2388 = vmatpush.bf16.msra.mxu0 %v2377
        %2389 = vmatpush.bf16.msra.mxu0 %v2376
        %2390 = vmatpush.bf16.msra.mxu0 %v2375
        %2391 = vmatpush.bf16.msra.mxu0 %v2374
        %2392 = vmatpush.bf16.msra.mxu0 %v2373
        %2393 = vmatpush.bf16.msra.mxu0 %v2372
        %2394 = vmatpush.bf16.msra.mxu0 %v2371
        %2395 = vmatmul.bf16.gmra.mxu0 %v2318
        %v2396 = vpop.f32.mrf.mxu0
        %v2397 = vadd.f32 %v2337, %v2396
        %v2398 = vpop.f32.mrf.mxu0
        %v2399 = vadd.f32 %v2337, %v2398
        %2400 = vdwg.mxu0
        %v2401 = vadd.f32 %v2260, %v2397
        %v2402 = vadd.f32 %v2261, %v2399
        %v2403 = vld [vmem:[%s622] sm:$0x1]
        %v2404 = vld [vmem:[%s625] sm:$0x1]
        %v2405 = vsel %vm694, %v2401, 0.0
        %2406 = vadd.xlane.f32.xlu0 %v2405
        %v2407 = vpop.xlane.xlu0 %2406
        %v2408 = vsel %vm694, %v2402, 0.0
        %2409 = vadd.xlane.f32.xlu0 %v2408
        %v2410 = vpop.xlane.xlu0 %2409
        %v2411 = vmul.f32 %v2407, %v2213
        %v2412 = vmul.f32 %v2410, %v2213
        %v2413 = vsub.f32 %v2401, %v2411
        %v2414 = vsub.f32 %v2402, %v2412
        %v2415 = vmul.f32 %v2413, %v2413
        %v2416 = vmul.f32 %v2414, %v2414
        %v2417 = vsel %vm694, %v2415, 0.0
        %2418 = vadd.xlane.f32.xlu0 %v2417
        %v2419 = vpop.xlane.xlu0 %2418
        %v2420 = vsel %vm694, %v2416, 0.0
        %2421 = vadd.xlane.f32.xlu0 %v2420
        %v2422 = vpop.xlane.xlu0 %2421
        %v2423 = vmul.f32 %v2419, %v2213
        %v2424 = vmul.f32 %v2422, %v2213
        %v2425 = vadd.f32 %v2423, 1e-05
        %v2426 = vadd.f32 %v2424, 1e-05
        %v2427 = vrsqrt.pop %v2425
        %v2428 = vmul.f32 %v2427, %v2425
        %v2429 = vmul.f32 %v2428, %v2427
        %v2430 = vmul.f32 0.5, %v2429
        %v2431 = vsub.f32 1.5, %v2430
        %v2432 = vmul.f32 %v2427, %v2431
        %vm2433 = vweird.f32 %v2425
        %vm2434 = vweird.f32 %v2427
        %vm2435 = vmor %vm2433, %vm2434
        %v2436 = vsel %vm2435, %v2427, %v2432
        %v2437 = vrsqrt.pop %v2426
        %v2438 = vmul.f32 %v2437, %v2426
        %v2439 = vmul.f32 %v2438, %v2437
        %v2440 = vmul.f32 0.5, %v2439
        %v2441 = vsub.f32 1.5, %v2440
        %v2442 = vmul.f32 %v2437, %v2441
        %vm2443 = vweird.f32 %v2426
        %vm2444 = vweird.f32 %v2437
        %vm2445 = vmor %vm2443, %vm2444
        %v2446 = vsel %vm2445, %v2437, %v2442
        %v2447 = vmul.f32 %v2413, %v2436
        %v2448 = vmul.f32 %v2414, %v2446
        %v2450 = vperm.slane %v2403, 0
        %v2452 = vmul.f32 %v2447, %v2450
        %v2453 = vmul.f32 %v2448, %v2450
        %v2455 = vperm.slane %v2404, 0
        %v2457 = vadd.f32 %v2452, %v2455
        %v2458 = vadd.f32 %v2453, %v2455
        %2459 = vst.msk [vmem:[#allocation4] sm:$0xff] %vm694, %v2457
        %2460 = vst.msk [vmem:[#allocation4 + $0x8] sm:$0xff] %vm694, %v2458
        // Predicated region
        $region81: #{tpu_custom_call.1} parent=75 // pred_check
          %p2461 = pneg %p393
        $region82: #{tpu_custom_call.1} parent=75 // pred_check_branch
          %2463 = sbr.rel (%p2461) target = $region84
        $region83: #{tpu_custom_call.1} parent=75 // pred_region
          %2465 = vsyncadd [#allocation5], 0
          %s2466 = sshll.u32 [#allocation4], 4
          %s2467 = int_to_ptr.vmem [resolvable:$true] %s2466
          %s2468 = sshll.u32 %s14, 4
          %s2469 = int_to_ptr.hbm [resolvable:$true] %s2468
          %2474 = dma.vmem_to_hbm [thread:$0]  %s2467, 256, %s2469, [#allocation5], 128, 128, 8
        $region84: #{tpu_custom_call.1} parent=75 // pred_fallthru
          _
        // Predicated region
        $region85: #{tpu_custom_call.1} parent=75 // pred_check
          %p2475 = pneg %p393
        $region86: #{tpu_custom_call.1} parent=75 // pred_check_branch
          %2477 = sbr.rel (%p2475) target = $region88
        $region87: #{tpu_custom_call.1} parent=75 // pred_region
          %2479 = dma.done [#allocation5], 256
        $region88: #{tpu_custom_call.1} parent=75 // pred_fallthru
          _
      $region76: #{tpu_custom_call.1} parent=5 // pred_fallthru
        _
      %p2480 = scmp.le.s32.totalorder 2, %s21
      // Predicated region
      $region89: #{tpu_custom_call.1} parent=5 // pred_check
        %p2481 = pneg %p2480
      $region90: #{tpu_custom_call.1} parent=5 // pred_check_branch
        %2483 = sbr.rel (%p2481) target = $region92
      $region91: #{tpu_custom_call.1} parent=5 // pred_region
        %s2484 = ssub.s32 %s21, 2
      $region92: #{tpu_custom_call.1} parent=5 // pred_fallthru
        _
    $region6: #{tpu_custom_call.1} parent=1 // loop_footer
      %s25 = sadd.s32 1, %s21
    $region7: #{tpu_custom_call.1} parent=1 // loop_footer_branch
      %20 = sbr.rel target = $region3
    $region8: #{tpu_custom_call.1} parent=1 // loop_exit
      _
    %2485 = vsyncpa [#allocation5], 1
    %s2486 = scalar_lea.sflag [#allocation5], 1
    %2487 = vsyncpa %s2486, 1

</llo_original>
